<compile_context>
chip_gen: v6e
topology: v6e:2x2x1
jax: 0.10.0
libtpu: 0.0.40
codegen_flags: <defaults>
</compile_context>

<pallas_src>
import jax
import jax.numpy as jnp
from jax.experimental import pallas as pl
from jax.experimental.pallas import tpu as pltpu


def _pick_frames_per_step(nf, cap=32):
    """Pick TF: multiple of 8 dividing nf, preferring >= 2 grid steps."""
    for tf in range(min(cap, nf), 0, -1):
        if nf % tf == 0 and tf % 8 == 0 and nf // tf >= 2:
            return tf
    for tf in range(min(cap, nf), 0, -1):
        if nf % tf == 0 and (tf % 8 == 0 or tf == nf):
            return tf
    return nf


def _frame_feature_kernel(x_ref, w1_ref, b1_ref, w2_ref, b2_ref, o_ref):
    """One grid step = TF (sample, frame) pairs.

    x_ref : [TF, C, HW]      frame pixels, HW on the lane axis
    w1_ref: [C, C_MID, 1]    1x1 conv weight (lane-broadcastable columns)
    b1_ref: [C_MID, 1]       conv bias
    w2_ref: [C_MID, FEAT]    linear head weight
    b2_ref: [1, FEAT]        linear head bias
    o_ref : [TF, FEAT]       extracted feature vectors
    """
    tf, c_in, hw = x_ref.shape
    x = x_ref[...].astype(jnp.float32)                       # [TF, C, HW]

    # 1x1 conv as C_in unrolled broadcast FMAs on the VPU (C_in is tiny, so a
    # MXU matmul with K=C_in would be almost entirely padded zero work).
    h = x[:, 0:1, :] * w1_ref[0][None, :, :]                 # [TF, C_MID, HW]
    for c in range(1, c_in):
        h = h + x[:, c : c + 1, :] * w1_ref[c][None, :, :]
    h = jnp.maximum(h + b1_ref[...][None, :, :], 0.0)        # bias + ReLU (VPU)

    # Global average pool over spatial positions: single lane reduce per batch.
    pooled = jnp.sum(h, axis=-1) * (1.0 / hw)                 # [TF, C_MID]

    # Linear head on the (otherwise idle) MXU, f32 accumulation.
    feat = jnp.dot(pooled, w2_ref[...].astype(jnp.float32),
                   preferred_element_type=jnp.float32)
    feat = feat + b2_ref[...].astype(jnp.float32)             # [TF, FEAT]
    o_ref[...] = feat.astype(o_ref.dtype)


def feature_extractor_forward(x, w1, b1, w2, b2, *, max_frames_per_step=32):
    """x: [N, FRAMES, C, H, W] -> features [N, FRAMES, FEAT_DIM]."""
    N, F, C, H, W = x.shape
    C_mid = w1.shape[1]
    feat_dim = w2.shape[1]
    HW = H * W
    NF = N * F
    TF = _pick_frames_per_step(NF, max_frames_per_step)

    # Free reshapes only (no HBM transpose pass): per-frame NCHW stays NCHW,
    # channels on the sublane axis, HW on the 128-lane axis.
    x_flat = x.reshape(NF, C, HW)
    w1_3d = w1.reshape(C, C_mid, 1)      # per-channel column, lane-broadcastable
    b1_2d = b1.reshape(C_mid, 1)
    b2_2d = b2.reshape(1, feat_dim)

    itemsize = jnp.dtype(x.dtype).itemsize
    w_itemsize = jnp.dtype(w1.dtype).itemsize
    flops = int(2 * NF * HW * C * C_mid + 2 * NF * C_mid * feat_dim)
    bytes_accessed = int(
        NF * C * HW * itemsize
        + (w1.size + b1.size + w2.size + b2.size) * w_itemsize
        + NF * feat_dim * itemsize
    )

    out = pl.pallas_call(
        _frame_feature_kernel,
        out_shape=jax.ShapeDtypeStruct((NF, feat_dim), x.dtype),
        grid_spec=pltpu.PrefetchScalarGridSpec(
            num_scalar_prefetch=0,
            grid=(NF // TF,),
            in_specs=[
                pl.BlockSpec((TF, C, HW), lambda i: (i, 0, 0)),
                pl.BlockSpec((C, C_mid, 1), lambda i: (0, 0, 0)),
                pl.BlockSpec((C_mid, 1), lambda i: (0, 0)),
                pl.BlockSpec((C_mid, feat_dim), lambda i: (0, 0)),
                pl.BlockSpec((1, feat_dim), lambda i: (0, 0)),
            ],
            out_specs=pl.BlockSpec((TF, feat_dim), lambda i: (i, 0)),
        ),
        compiler_params=pltpu.CompilerParams(
            dimension_semantics=("parallel",),   # shard steps across v7x's 2 TCs
        ),
        cost_estimate=pl.CostEstimate(
            flops=flops, transcendentals=0, bytes_accessed=bytes_accessed),
    )(x_flat, w1_3d, b1_2d, w2, b2_2d)

    return out.reshape(N, F, feat_dim)


def _reference_forward(x, w1, b1, w2, b2):
    """Pure-JAX reference for correctness checking."""
    N, F, C, H, W = x.shape
    xf = x.reshape(N * F, C, H * W).astype(jnp.float32)
    h = jnp.maximum(jnp.einsum('fch,cm->fmh', xf, w1) + b1[None, :, None], 0.0)
    pooled = jnp.mean(h, axis=-1)
    feat = pooled @ w2 + b2
    return feat.reshape(N, F, -1).astype(x.dtype)


if __name__ == "__main__":
    # Small shapes consistent with [N, FRAMES, OTHER_DATA_DIMS] video input.
    N, FRAMES, C, H, W = 2, 8, 4, 16, 16
    C_MID, FEAT_DIM = 32, 32

    key = jax.random.PRNGKey(0)
    kx, k1, kb1, k2, kb2 = jax.random.split(key, 5)

    x = jax.random.normal(kx, (N, FRAMES, C, H, W), dtype=jnp.float32)
    # Deterministic synthetic backbone parameters.
    w1 = jax.random.normal(k1, (C, C_MID), dtype=jnp.float32) * 0.1
    b1 = jax.random.normal(kb1, (C_MID,), dtype=jnp.float32) * 0.01
    w2 = jax.random.normal(k2, (C_MID, FEAT_DIM), dtype=jnp.float32) * 0.1
    b2 = jax.random.normal(kb2, (FEAT_DIM,), dtype=jnp.float32) * 0.01

    feats = jax.jit(feature_extractor_forward)(x, w1, b1, w2, b2)
    feats = jax.block_until_ready(feats)

    ref = _reference_forward(x, w1, b1, w2, b2)
    assert feats.shape == (N, FRAMES, FEAT_DIM), feats.shape
    assert jnp.allclose(feats, ref, atol=1e-4, rtol=1e-4), "mismatch vs reference"

    # TODO(synk): loading pre-extracted features from disk (FeatureExtractor.load)
    # and sample_map bookkeeping have no Pallas equivalent (pure host-side I/O).
    print("KERNEL_OK")
</pallas_src>

<mosaic_0001>
module attributes {stable_mosaic.version = 11 : i64} {
  func.func @_frame_feature_kernel(%arg0: i32, %arg1: memref<8x4x256xf32, #tpu.memory_space<vmem>>, %arg2: memref<4x32x1xf32, #tpu.memory_space<vmem>>, %arg3: memref<32x1xf32, #tpu.memory_space<vmem>>, %arg4: memref<32x32xf32, #tpu.memory_space<vmem>>, %arg5: memref<1x32xf32, #tpu.memory_space<vmem>>, %arg6: memref<8x32xf32, #tpu.memory_space<vmem>>) attributes {dimension_semantics = [#tpu.dimension_semantics<parallel>], iteration_bounds = array<i64: 2>, scalar_prefetch = 0 : i64, scratch_operands = 0 : i64, tpu.core_type = #tpu.core_type<tc>, window_params = [{transform_indices = @transform_0, window_bounds = array<i64: 8, 4, 256>}, {pipeline_mode = #tpu.pipeline_mode<synchronous>, transform_indices = @transform_1, window_bounds = array<i64: 4, 32, 1>}, {pipeline_mode = #tpu.pipeline_mode<synchronous>, transform_indices = @transform_2, window_bounds = array<i64: 32, 1>}, {pipeline_mode = #tpu.pipeline_mode<synchronous>, transform_indices = @transform_3, window_bounds = array<i64: 32, 32>}, {pipeline_mode = #tpu.pipeline_mode<synchronous>, transform_indices = @transform_4, window_bounds = array<i64: 1, 32>}, {transform_indices = @transform_5, window_bounds = array<i64: 8, 32>}]} {
    %c0 = arith.constant 0 : index
    %c0_0 = arith.constant 0 : index
    %c0_1 = arith.constant 0 : index
    %0 = vector.load %arg1[%c0, %c0_0, %c0_1] : memref<8x4x256xf32, #tpu.memory_space<vmem>>, vector<8x4x256xf32>
    %1 = vector.extract_strided_slice %0 {offsets = [0, 0, 0], sizes = [8, 1, 256], strides = [1, 1, 1]} : vector<8x4x256xf32> to vector<8x1x256xf32>
    %c0_2 = arith.constant 0 : index
    %c0_3 = arith.constant 0 : index
    %c0_4 = arith.constant 0 : index
    %2 = vector.load %arg2[%c0_2, %c0_3, %c0_4] : memref<4x32x1xf32, #tpu.memory_space<vmem>>, vector<1x32x1xf32>
    %3 = vector.shape_cast %2 : vector<1x32x1xf32> to vector<32x1xf32>
    %4 = vector.shape_cast %3 : vector<32x1xf32> to vector<1x32x1xf32>
    %5 = vector.broadcast %1 : vector<8x1x256xf32> to vector<8x32x256xf32>
    %6 = vector.broadcast %4 : vector<1x32x1xf32> to vector<8x32x256xf32>
    %7 = arith.mulf %5, %6 : vector<8x32x256xf32>
    %8 = vector.extract_strided_slice %0 {offsets = [0, 1, 0], sizes = [8, 1, 256], strides = [1, 1, 1]} : vector<8x4x256xf32> to vector<8x1x256xf32>
    %c1 = arith.constant 1 : index
    %c0_5 = arith.constant 0 : index
    %c0_6 = arith.constant 0 : index
    %9 = vector.load %arg2[%c1, %c0_5, %c0_6] : memref<4x32x1xf32, #tpu.memory_space<vmem>>, vector<1x32x1xf32>
    %10 = vector.shape_cast %9 : vector<1x32x1xf32> to vector<32x1xf32>
    %11 = vector.shape_cast %10 : vector<32x1xf32> to vector<1x32x1xf32>
    %12 = vector.broadcast %8 : vector<8x1x256xf32> to vector<8x32x256xf32>
    %13 = vector.broadcast %11 : vector<1x32x1xf32> to vector<8x32x256xf32>
    %14 = arith.mulf %12, %13 : vector<8x32x256xf32>
    %15 = arith.addf %7, %14 : vector<8x32x256xf32>
    %16 = vector.extract_strided_slice %0 {offsets = [0, 2, 0], sizes = [8, 1, 256], strides = [1, 1, 1]} : vector<8x4x256xf32> to vector<8x1x256xf32>
    %c2 = arith.constant 2 : index
    %c0_7 = arith.constant 0 : index
    %c0_8 = arith.constant 0 : index
    %17 = vector.load %arg2[%c2, %c0_7, %c0_8] : memref<4x32x1xf32, #tpu.memory_space<vmem>>, vector<1x32x1xf32>
    %18 = vector.shape_cast %17 : vector<1x32x1xf32> to vector<32x1xf32>
    %19 = vector.shape_cast %18 : vector<32x1xf32> to vector<1x32x1xf32>
    %20 = vector.broadcast %16 : vector<8x1x256xf32> to vector<8x32x256xf32>
    %21 = vector.broadcast %19 : vector<1x32x1xf32> to vector<8x32x256xf32>
    %22 = arith.mulf %20, %21 : vector<8x32x256xf32>
    %23 = arith.addf %15, %22 : vector<8x32x256xf32>
    %24 = vector.extract_strided_slice %0 {offsets = [0, 3, 0], sizes = [8, 1, 256], strides = [1, 1, 1]} : vector<8x4x256xf32> to vector<8x1x256xf32>
    %c3 = arith.constant 3 : index
    %c0_9 = arith.constant 0 : index
    %c0_10 = arith.constant 0 : index
    %25 = vector.load %arg2[%c3, %c0_9, %c0_10] : memref<4x32x1xf32, #tpu.memory_space<vmem>>, vector<1x32x1xf32>
    %26 = vector.shape_cast %25 : vector<1x32x1xf32> to vector<32x1xf32>
    %27 = vector.shape_cast %26 : vector<32x1xf32> to vector<1x32x1xf32>
    %28 = vector.broadcast %24 : vector<8x1x256xf32> to vector<8x32x256xf32>
    %29 = vector.broadcast %27 : vector<1x32x1xf32> to vector<8x32x256xf32>
    %30 = arith.mulf %28, %29 : vector<8x32x256xf32>
    %31 = arith.addf %23, %30 : vector<8x32x256xf32>
    %c0_11 = arith.constant 0 : index
    %c0_12 = arith.constant 0 : index
    %32 = vector.load %arg3[%c0_11, %c0_12] : memref<32x1xf32, #tpu.memory_space<vmem>>, vector<32x1xf32>
    %33 = vector.shape_cast %32 : vector<32x1xf32> to vector<1x32x1xf32>
    %34 = vector.broadcast %33 : vector<1x32x1xf32> to vector<8x32x256xf32>
    %35 = arith.addf %31, %34 : vector<8x32x256xf32>
    %cst = arith.constant 0.000000e+00 : f32
    %36 = vector.broadcast %cst : f32 to vector<8x32x256xf32>
    %37 = arith.maximumf %35, %36 : vector<8x32x256xf32>
    %cst_13 = arith.constant dense<0.000000e+00> : vector<8x32xf32>
    %38 = vector.multi_reduction <add>, %37, %cst_13 [2] : vector<8x32x256xf32> to vector<8x32xf32>
    %cst_14 = arith.constant 3.906250e-03 : f32
    %39 = vector.broadcast %cst_14 : f32 to vector<8x32xf32>
    %40 = arith.mulf %38, %39 : vector<8x32xf32>
    %c0_15 = arith.constant 0 : index
    %c0_16 = arith.constant 0 : index
    %41 = vector.load %arg4[%c0_15, %c0_16] : memref<32x32xf32, #tpu.memory_space<vmem>>, vector<32x32xf32>
    %cst_17 = arith.constant dense<0.000000e+00> : vector<8x32xf32>
    %42 = tpu.matmul %40, %41, %cst_17 {dimension_numbers = #tpu.dot_dimension_numbers<[1], [0], [0], [1], [0, 0, 1, 1], [], []>} : vector<8x32xf32>, vector<32x32xf32>, vector<8x32xf32> -> vector<8x32xf32>
    %c0_18 = arith.constant 0 : index
    %c0_19 = arith.constant 0 : index
    %43 = vector.load %arg5[%c0_18, %c0_19] : memref<1x32xf32, #tpu.memory_space<vmem>>, vector<1x32xf32>
    %44 = vector.broadcast %43 : vector<1x32xf32> to vector<8x32xf32>
    %45 = arith.addf %42, %44 : vector<8x32xf32>
    %c0_20 = arith.constant 0 : index
    %c0_21 = arith.constant 0 : index
    %46 = vector.load %arg6[%c0_20, %c0_21] : memref<8x32xf32, #tpu.memory_space<vmem>>, vector<8x32xf32>
    tpu.vector_store %arg6[%c0_20, %c0_21], %45 {strides = array<i32>} : memref<8x32xf32, #tpu.memory_space<vmem>>, vector<8x32xf32>,
    return
  }
  func.func @transform_0(%arg0: i32) -> (i32, i32, i32) {
    %c0_i32 = arith.constant 0 : i32
    %c0_i32_0 = arith.constant 0 : i32
    %c0_i32_1 = arith.constant 0 : i32
    return %arg0, %c0_i32, %c0_i32_0 : i32, i32, i32
  }
  func.func @transform_1(%arg0: i32) -> (i32, i32, i32) {
    %c0_i32 = arith.constant 0 : i32
    %c0_i32_0 = arith.constant 0 : i32
    %c0_i32_1 = arith.constant 0 : i32
    %c0_i32_2 = arith.constant 0 : i32
    return %c0_i32, %c0_i32_0, %c0_i32_1 : i32, i32, i32
  }
  func.func @transform_2(%arg0: i32) -> (i32, i32) {
    %c0_i32 = arith.constant 0 : i32
    %c0_i32_0 = arith.constant 0 : i32
    %c0_i32_1 = arith.constant 0 : i32
    return %c0_i32, %c0_i32_0 : i32, i32
  }
  func.func @transform_3(%arg0: i32) -> (i32, i32) {
    %c0_i32 = arith.constant 0 : i32
    %c0_i32_0 = arith.constant 0 : i32
    %c0_i32_1 = arith.constant 0 : i32
    return %c0_i32, %c0_i32_0 : i32, i32
  }
  func.func @transform_4(%arg0: i32) -> (i32, i32) {
    %c0_i32 = arith.constant 0 : i32
    %c0_i32_0 = arith.constant 0 : i32
    %c0_i32_1 = arith.constant 0 : i32
    return %c0_i32, %c0_i32_0 : i32, i32
  }
  func.func @transform_5(%arg0: i32) -> (i32, i32) {
    %c0_i32 = arith.constant 0 : i32
    %c0_i32_0 = arith.constant 0 : i32
    return %arg0, %c0_i32 : i32, i32
  }
}

</mosaic_0001>

<llo_original>
// kernel: feature_extractor_forward.1
$region0: #{feature_extractor_forward.1}
  #allocation0 [shape = 'u32[]', space=smem, size = 0x4, offset = 0x4, fixed_abs, tag = 'smem constant byte address 0x4 - core index']
  #allocation1 [shape = 'u32[144,128]{1,0:T(1,128)}', space=vmem, size = 0x12000, scoped, tag = 'internal scratch']
  %s0 = inlined_call_operand.vmem [shape: f32[16,4,256], index: 0, kind: input, shape index: {}]
  %s1 = inlined_call_operand.vmem [shape: f32[4,32,1], index: 1, kind: input, shape index: {}]
  %s2 = inlined_call_operand.vmem [shape: f32[32,1], index: 2, kind: input, shape index: {}]
  %s3 = inlined_call_operand.vmem [shape: f32[32,32], index: 3, kind: input, shape index: {}]
  %s4 = inlined_call_operand.vmem [shape: f32[1,32], index: 4, kind: input, shape index: {}]
  %s5 = inlined_call_operand.hbm [shape: f32[16,32], index: 5, kind: output, shape index: {}]
  %s6 = sld [smem:[#allocation0]]
  $region53: #{feature_extractor_forward.1} parent=0
    _
  %s8 = ssub.s32 1, %s6
  %s9 = scalar_select 0, %s8, %s6
  $region1: #{feature_extractor_forward.1} parent=0
    #allocation2 [shape = 'u8[8192]{0}', space=vmem, size = 0x2000, scoped, tag = 'output window, operand 0']
    #allocation3 [shape = 's32[2]{0}', space=sflag, size = 0x8, scoped, tag = 'scoped memory for feature_extractor_forward.1']
    %10 = vsyncpa [#allocation3], 0
    %s11 = scalar_lea.sflag [#allocation3], 1
    %12 = vsyncpa %s11, 0
    loop: start=0, step=1, limit=4
    $region2: #{feature_extractor_forward.1} parent=1 // loop_pre_header
      _
    $region3: #{feature_extractor_forward.1} parent=1 // loop_header
      %s14 = sphi 0, %s18
      %p15 = scmp.ge.s32.totalorder %s14, 4
      %s24 = sphi 0, %s26
      %s27 = sphi 0, %s24
      %s28 = sphi 0, %s27
      %s44 = sphi 0, %s28
      %s48 = sphi 0, %s48
      %s50 = sphi 0, %s48
      %s51 = sphi 0, %s50
      %s65 = sphi 0, %s51
      %s69 = sphi 0, %s69
      %s71 = sphi 0, %s69
      %s72 = sphi 0, %s71
      %s86 = sphi 0, %s72
      %s90 = sphi 0, %s90
      %s92 = sphi 0, %s90
      %s93 = sphi 0, %s92
      %s107 = sphi 0, %s93
      %s111 = sphi 0, %s111
      %s113 = sphi 0, %s111
      %s114 = sphi 0, %s113
      %s128 = sphi 0, %s114
      %s134 = sphi 0, %s136
      %s137 = sphi 0, %s134
      %s138 = sphi 0, %s137
      %s154 = sphi 0, %s138
    $region4: #{feature_extractor_forward.1} parent=1 // loop_header_branch
      %17 = sbr.rel (%p15) target = $region8
    $region5: #{feature_extractor_forward.1} parent=1 // loop_body
      %s19 = ssub.s32 %s14, 1
      %s20 = ssub.s32 %s14, 2
      %s21 = sadd.s32 %s14, 1
      %s22 = ssub.s32 %s14, %s21
      %p23 = scmp.eq.s32.totalorder %s22, 0
      %s25 = sadd.s32 %s24, 1
      %s26 = scalar_select %p23, %s24, %s25
      %p29 = pneg %p23
      %p30 = scmp.eq.s32.totalorder %s14, 1
      %p31 = por %p29, %p30
      %p32 = scmp.ne.s32.totalorder %s24, %s27
      %p33 = scmp.eq.s32.totalorder %s14, 0
      %p34 = por %p32, %p33
      %p35 = scmp.ne.s32.totalorder %s24, %s27
      %p36 = scmp.eq.s32.totalorder %s19, 1
      %p37 = por %p35, %p36
      %p38 = scmp.ne.s32.totalorder %s27, %s28
      %p39 = scmp.eq.s32.totalorder %s19, 0
      %p40 = por %p38, %p39
      %p41 = scmp.ne.s32.totalorder %s27, %s28
      %p42 = scmp.eq.s32.totalorder %s20, 1
      %p43 = por %p41, %p42
      %p45 = scmp.ne.s32.totalorder %s28, %s44
      %p46 = scmp.eq.s32.totalorder %s20, 0
      %p47 = por %p45, %p46
      %s49 = sadd.s32 %s48, 1
      %p52 = scmp.eq.s32.totalorder %s14, 1
      %p53 = scmp.ne.s32.totalorder %s48, %s50
      %p54 = scmp.eq.s32.totalorder %s14, 0
      %p55 = por %p53, %p54
      %p56 = scmp.ne.s32.totalorder %s48, %s50
      %p57 = scmp.eq.s32.totalorder %s19, 1
      %p58 = por %p56, %p57
      %p59 = scmp.ne.s32.totalorder %s50, %s51
      %p60 = scmp.eq.s32.totalorder %s19, 0
      %p61 = por %p59, %p60
      %p62 = scmp.ne.s32.totalorder %s50, %s51
      %p63 = scmp.eq.s32.totalorder %s20, 1
      %p64 = por %p62, %p63
      %p66 = scmp.ne.s32.totalorder %s51, %s65
      %p67 = scmp.eq.s32.totalorder %s20, 0
      %p68 = por %p66, %p67
      %s70 = sadd.s32 %s69, 1
      %p73 = scmp.eq.s32.totalorder %s14, 1
      %p74 = scmp.ne.s32.totalorder %s69, %s71
      %p75 = scmp.eq.s32.totalorder %s14, 0
      %p76 = por %p74, %p75
      %p77 = scmp.ne.s32.totalorder %s69, %s71
      %p78 = scmp.eq.s32.totalorder %s19, 1
      %p79 = por %p77, %p78
      %p80 = scmp.ne.s32.totalorder %s71, %s72
      %p81 = scmp.eq.s32.totalorder %s19, 0
      %p82 = por %p80, %p81
      %p83 = scmp.ne.s32.totalorder %s71, %s72
      %p84 = scmp.eq.s32.totalorder %s20, 1
      %p85 = por %p83, %p84
      %p87 = scmp.ne.s32.totalorder %s72, %s86
      %p88 = scmp.eq.s32.totalorder %s20, 0
      %p89 = por %p87, %p88
      %s91 = sadd.s32 %s90, 1
      %p94 = scmp.eq.s32.totalorder %s14, 1
      %p95 = scmp.ne.s32.totalorder %s90, %s92
      %p96 = scmp.eq.s32.totalorder %s14, 0
      %p97 = por %p95, %p96
      %p98 = scmp.ne.s32.totalorder %s90, %s92
      %p99 = scmp.eq.s32.totalorder %s19, 1
      %p100 = por %p98, %p99
      %p101 = scmp.ne.s32.totalorder %s92, %s93
      %p102 = scmp.eq.s32.totalorder %s19, 0
      %p103 = por %p101, %p102
      %p104 = scmp.ne.s32.totalorder %s92, %s93
      %p105 = scmp.eq.s32.totalorder %s20, 1
      %p106 = por %p104, %p105
      %p108 = scmp.ne.s32.totalorder %s93, %s107
      %p109 = scmp.eq.s32.totalorder %s20, 0
      %p110 = por %p108, %p109
      %s112 = sadd.s32 %s111, 1
      %p115 = scmp.eq.s32.totalorder %s14, 1
      %p116 = scmp.ne.s32.totalorder %s111, %s113
      %p117 = scmp.eq.s32.totalorder %s14, 0
      %p118 = por %p116, %p117
      %p119 = scmp.ne.s32.totalorder %s111, %s113
      %p120 = scmp.eq.s32.totalorder %s19, 1
      %p121 = por %p119, %p120
      %p122 = scmp.ne.s32.totalorder %s113, %s114
      %p123 = scmp.eq.s32.totalorder %s19, 0
      %p124 = por %p122, %p123
      %p125 = scmp.ne.s32.totalorder %s113, %s114
      %p126 = scmp.eq.s32.totalorder %s20, 1
      %p127 = por %p125, %p126
      %p129 = scmp.ne.s32.totalorder %s114, %s128
      %p130 = scmp.eq.s32.totalorder %s20, 0
      %p131 = por %p129, %p130
      %s132 = ssub.s32 %s14, %s21
      %p133 = scmp.eq.s32.totalorder %s132, 0
      %s135 = sadd.s32 %s134, 1
      %s136 = scalar_select %p133, %s134, %s135
      %p139 = pneg %p133
      %p140 = scmp.eq.s32.totalorder %s14, 1
      %p141 = por %p139, %p140
      %p142 = scmp.ne.s32.totalorder %s134, %s137
      %p143 = scmp.eq.s32.totalorder %s14, 0
      %p144 = por %p142, %p143
      %p145 = scmp.ne.s32.totalorder %s134, %s137
      %p146 = scmp.eq.s32.totalorder %s19, 1
      %p147 = por %p145, %p146
      %p148 = scmp.ne.s32.totalorder %s137, %s138
      %p149 = scmp.eq.s32.totalorder %s19, 0
      %p150 = por %p148, %p149
      %p151 = scmp.ne.s32.totalorder %s137, %s138
      %p152 = scmp.eq.s32.totalorder %s20, 1
      %p153 = por %p151, %p152
      %p155 = scmp.ne.s32.totalorder %s138, %s154
      %p156 = scmp.eq.s32.totalorder %s20, 0
      %p157 = por %p155, %p156
      %p158 = scmp.le.s32.totalorder 1, %s14
      %p159 = scmp.lt.s32.totalorder %s14, 3
      %p160 = pnand %p158, %p159
      %p161 = pneg %p160
      // Predicated region
      $region9: #{feature_extractor_forward.1} parent=5 // pred_check
        _
      $region10: #{feature_extractor_forward.1} parent=5 // pred_check_branch
        %163 = sbr.rel (%p160) target = $region12
      $region11: #{feature_extractor_forward.1} parent=5 // pred_region
        %s164 = ssub.s32 %s14, 1
        // Predicated region
        $region13: #{feature_extractor_forward.1} parent=11 // pred_check
          %p165 = pneg %p61
        $region14: #{feature_extractor_forward.1} parent=11 // pred_check_branch
          %167 = sbr.rel (%p165) target = $region16
        $region15: #{feature_extractor_forward.1} parent=11 // pred_region
          _
        $region16: #{feature_extractor_forward.1} parent=11 // pred_fallthru
          _
        // Predicated region
        $region17: #{feature_extractor_forward.1} parent=11 // pred_check
          %p168 = pneg %p82
        $region18: #{feature_extractor_forward.1} parent=11 // pred_check_branch
          %170 = sbr.rel (%p168) target = $region20
        $region19: #{feature_extractor_forward.1} parent=11 // pred_region
          _
        $region20: #{feature_extractor_forward.1} parent=11 // pred_fallthru
          _
        // Predicated region
        $region21: #{feature_extractor_forward.1} parent=11 // pred_check
          %p171 = pneg %p103
        $region22: #{feature_extractor_forward.1} parent=11 // pred_check_branch
          %173 = sbr.rel (%p171) target = $region24
        $region23: #{feature_extractor_forward.1} parent=11 // pred_region
          _
        $region24: #{feature_extractor_forward.1} parent=11 // pred_fallthru
          _
        // Predicated region
        $region25: #{feature_extractor_forward.1} parent=11 // pred_check
          %p174 = pneg %p124
        $region26: #{feature_extractor_forward.1} parent=11 // pred_check_branch
          %176 = sbr.rel (%p174) target = $region28
        $region27: #{feature_extractor_forward.1} parent=11 // pred_region
          _
        $region28: #{feature_extractor_forward.1} parent=11 // pred_fallthru
          _
      $region12: #{feature_extractor_forward.1} parent=5 // pred_fallthru
        _
      %p177 = scmp.lt.s32.totalorder %s14, 2
      // Predicated region
      $region29: #{feature_extractor_forward.1} parent=5 // pred_check
        %p178 = pneg %p177
      $region30: #{feature_extractor_forward.1} parent=5 // pred_check_branch
        %180 = sbr.rel (%p178) target = $region32
      $region31: #{feature_extractor_forward.1} parent=5 // pred_region
        // Predicated region
        $region33: #{feature_extractor_forward.1} parent=31 // pred_check
          %p181 = pneg %p34
        $region34: #{feature_extractor_forward.1} parent=31 // pred_check_branch
          %183 = sbr.rel (%p181) target = $region36
        $region35: #{feature_extractor_forward.1} parent=31 // pred_region
          %s184 = smul.u32 8, %s14
          %p185 = scmp.lt.s32.totalorder %s184, 15
          %s186 = scalar_select %p185, %s184, 15
          %s187 = smul.addr %s186, 2
          %s188 = smul.addr %s187, 4
          %s189 = scalar_lea.vmem %s0, %s188
          %s190 = smul.u32 8, %s14
        $region36: #{feature_extractor_forward.1} parent=31 // pred_fallthru
          _
      $region32: #{feature_extractor_forward.1} parent=5 // pred_fallthru
        _
      %p191 = scmp.le.s32.totalorder 1, %s14
      %p192 = scmp.lt.s32.totalorder %s14, 3
      %p193 = pnand %p191, %p192
      %p194 = pneg %p193
      // Predicated region
      $region37: #{feature_extractor_forward.1} parent=5 // pred_check
        _
      $region38: #{feature_extractor_forward.1} parent=5 // pred_check_branch
        %196 = sbr.rel (%p193) target = $region40
      $region39: #{feature_extractor_forward.1} parent=5 // pred_region
        %s197 = ssub.s32 %s14, 1
        %s198 = smul.u32 8, %s19
        %p199 = scmp.lt.s32.totalorder %s198, 15
        %s200 = scalar_select %p199, %s198, 15
        %s201 = smul.addr %s200, 2
        %s202 = smul.addr %s201, 4
        %s203 = scalar_lea.vmem %s0, %s202
        %p204 = pneg %p40
        %p205 = pneg %p37
        %p206 = pneg %p61
        %p207 = pneg %p58
        %p208 = pneg %p82
        %p209 = pneg %p79
        %p210 = pneg %p103
        %p211 = pneg %p100
        %p212 = pneg %p124
        %p213 = pneg %p121
        %p214 = pneg %p150
        %p215 = pneg %p147
        %s216 = sand.u32 %s137, 1
        %s217 = scalar_lea.sflag [#allocation3], %s216
        %s218 = sand.u32 %s137, 1
        %s219 = smul.addr %s218, 8
        %s220 = scalar_lea.vmem [#allocation2], %s219
        %s221 = smul.u32 8, %s19
        %p222 = scmp.lt.s32.totalorder %s221, 15
        %s223 = scalar_select %p222, %s221, 15
        %s224 = smul.addr %s223, 2
        %s225 = smul.addr %s224, 4
        %s226 = scalar_lea.vmem %s0, %s225
        %s227 = smul.u32 8, %s19
        %v228 = vld [vmem:[%s226] sm:$0xff]
        %v229 = vld [vmem:[%s226 + $0x8] sm:$0xff]
        %v230 = vld [vmem:[%s226 + $0x10] sm:$0xff]
        %v231 = vld [vmem:[%s226 + $0x18] sm:$0xff]
        %v232 = vld [vmem:[%s226 + $0x20] sm:$0xff]
        %v233 = vld [vmem:[%s226 + $0x28] sm:$0xff]
        %v234 = vld [vmem:[%s226 + $0x30] sm:$0xff]
        %v235 = vld [vmem:[%s226 + $0x38] sm:$0xff]
        %v236 = vld [vmem:[%s1] sm:$0xff]
        %v237 = vld [vmem:[%s1 + $0x8] sm:$0xff]
        %v238 = vld [vmem:[%s1 + $0x10] sm:$0xff]
        %v239 = vld [vmem:[%s1 + $0x18] sm:$0xff]
        %v248 = vlaneseq
        %v249 = vshrl.u32 %v248, 7
        %v250 = vsub.s32 0, %v249
        %v251 = vrot.slane %v228, %v250
        %v252 = vlaneseq
        %v253 = vshrl.u32 %v252, 7
        %v254 = vsub.s32 4, %v253
        %v255 = vrot.slane %v228, %v254
        %v256 = vlaneseq
        %v257 = vshrl.u32 %v256, 7
        %v258 = vsub.s32 0, %v257
        %v259 = vrot.slane %v229, %v258
        %v260 = vlaneseq
        %v261 = vshrl.u32 %v260, 7
        %v262 = vsub.s32 4, %v261
        %v263 = vrot.slane %v229, %v262
        %v264 = vlaneseq
        %v265 = vshrl.u32 %v264, 7
        %v266 = vsub.s32 0, %v265
        %v267 = vrot.slane %v230, %v266
        %v268 = vlaneseq
        %v269 = vshrl.u32 %v268, 7
        %v270 = vsub.s32 4, %v269
        %v271 = vrot.slane %v230, %v270
        %v272 = vlaneseq
        %v273 = vshrl.u32 %v272, 7
        %v274 = vsub.s32 0, %v273
        %v275 = vrot.slane %v231, %v274
        %v276 = vlaneseq
        %v277 = vshrl.u32 %v276, 7
        %v278 = vsub.s32 4, %v277
        %v279 = vrot.slane %v231, %v278
        %v280 = vlaneseq
        %v281 = vshrl.u32 %v280, 7
        %v282 = vsub.s32 0, %v281
        %v283 = vrot.slane %v232, %v282
        %v284 = vlaneseq
        %v285 = vshrl.u32 %v284, 7
        %v286 = vsub.s32 4, %v285
        %v287 = vrot.slane %v232, %v286
        %v288 = vlaneseq
        %v289 = vshrl.u32 %v288, 7
        %v290 = vsub.s32 0, %v289
        %v291 = vrot.slane %v233, %v290
        %v292 = vlaneseq
        %v293 = vshrl.u32 %v292, 7
        %v294 = vsub.s32 4, %v293
        %v295 = vrot.slane %v233, %v294
        %v296 = vlaneseq
        %v297 = vshrl.u32 %v296, 7
        %v298 = vsub.s32 0, %v297
        %v299 = vrot.slane %v234, %v298
        %v300 = vlaneseq
        %v301 = vshrl.u32 %v300, 7
        %v302 = vsub.s32 4, %v301
        %v303 = vrot.slane %v234, %v302
        %v304 = vlaneseq
        %v305 = vshrl.u32 %v304, 7
        %v306 = vsub.s32 0, %v305
        %v307 = vrot.slane %v235, %v306
        %v308 = vlaneseq
        %v309 = vshrl.u32 %v308, 7
        %v310 = vsub.s32 4, %v309
        %v311 = vrot.slane %v235, %v310
        %v328 = vlaneseq
        %v329 = vshrl.u32 %v328, 7
        %v330 = vsub.s32 0, %v329
        %v331 = vrot.slane %v251, %v330
        %v332 = vlaneseq
        %v333 = vshrl.u32 %v332, 7
        %v334 = vsub.s32 0, %v333
        %v335 = vrot.slane %v255, %v334
        %v336 = vlaneseq
        %v337 = vshrl.u32 %v336, 7
        %v338 = vsub.s32 0, %v337
        %v339 = vrot.slane %v259, %v338
        %v340 = vlaneseq
        %v341 = vshrl.u32 %v340, 7
        %v342 = vsub.s32 0, %v341
        %v343 = vrot.slane %v263, %v342
        %v344 = vlaneseq
        %v345 = vshrl.u32 %v344, 7
        %v346 = vsub.s32 0, %v345
        %v347 = vrot.slane %v267, %v346
        %v348 = vlaneseq
        %v349 = vshrl.u32 %v348, 7
        %v350 = vsub.s32 0, %v349
        %v351 = vrot.slane %v271, %v350
        %v352 = vlaneseq
        %v353 = vshrl.u32 %v352, 7
        %v354 = vsub.s32 0, %v353
        %v355 = vrot.slane %v275, %v354
        %v356 = vlaneseq
        %v357 = vshrl.u32 %v356, 7
        %v358 = vsub.s32 0, %v357
        %v359 = vrot.slane %v279, %v358
        %v360 = vlaneseq
        %v361 = vshrl.u32 %v360, 7
        %v362 = vsub.s32 0, %v361
        %v363 = vrot.slane %v283, %v362
        %v364 = vlaneseq
        %v365 = vshrl.u32 %v364, 7
        %v366 = vsub.s32 0, %v365
        %v367 = vrot.slane %v287, %v366
        %v368 = vlaneseq
        %v369 = vshrl.u32 %v368, 7
        %v370 = vsub.s32 0, %v369
        %v371 = vrot.slane %v291, %v370
        %v372 = vlaneseq
        %v373 = vshrl.u32 %v372, 7
        %v374 = vsub.s32 0, %v373
        %v375 = vrot.slane %v295, %v374
        %v376 = vlaneseq
        %v377 = vshrl.u32 %v376, 7
        %v378 = vsub.s32 0, %v377
        %v379 = vrot.slane %v299, %v378
        %v380 = vlaneseq
        %v381 = vshrl.u32 %v380, 7
        %v382 = vsub.s32 0, %v381
        %v383 = vrot.slane %v303, %v382
        %v384 = vlaneseq
        %v385 = vshrl.u32 %v384, 7
        %v386 = vsub.s32 0, %v385
        %v387 = vrot.slane %v307, %v386
        %v388 = vlaneseq
        %v389 = vshrl.u32 %v388, 7
        %v390 = vsub.s32 0, %v389
        %v391 = vrot.slane %v311, %v390
        %393 = vset.pattern.permute.xlu0 0
        %394 = vperm.xlu0 %393, %v236
        %v395 = vpop.permute.xlu0 %394
        %398 = vset.pattern.permute.xlu0 0
        %399 = vperm.xlu0 %398, %v237
        %v400 = vpop.permute.xlu0 %399
        %403 = vset.pattern.permute.xlu0 0
        %404 = vperm.xlu0 %403, %v238
        %v405 = vpop.permute.xlu0 %404
        %408 = vset.pattern.permute.xlu0 0
        %409 = vperm.xlu0 %408, %v239
        %v410 = vpop.permute.xlu0 %409
        %v412 = vmul.f32 %v331, %v395
        %v413 = vmul.f32 %v335, %v395
        %v414 = vmul.f32 %v331, %v400
        %v415 = vmul.f32 %v335, %v400
        %v416 = vmul.f32 %v331, %v405
        %v417 = vmul.f32 %v335, %v405
        %v418 = vmul.f32 %v331, %v410
        %v419 = vmul.f32 %v335, %v410
        %v420 = vmul.f32 %v339, %v395
        %v421 = vmul.f32 %v343, %v395
        %v422 = vmul.f32 %v339, %v400
        %v423 = vmul.f32 %v343, %v400
        %v424 = vmul.f32 %v339, %v405
        %v425 = vmul.f32 %v343, %v405
        %v426 = vmul.f32 %v339, %v410
        %v427 = vmul.f32 %v343, %v410
        %v428 = vmul.f32 %v347, %v395
        %v429 = vmul.f32 %v351, %v395
        %v430 = vmul.f32 %v347, %v400
        %v431 = vmul.f32 %v351, %v400
        %v432 = vmul.f32 %v347, %v405
        %v433 = vmul.f32 %v351, %v405
        %v434 = vmul.f32 %v347, %v410
        %v435 = vmul.f32 %v351, %v410
        %v436 = vmul.f32 %v355, %v395
        %v437 = vmul.f32 %v359, %v395
        %v438 = vmul.f32 %v355, %v400
        %v439 = vmul.f32 %v359, %v400
        %v440 = vmul.f32 %v355, %v405
        %v441 = vmul.f32 %v359, %v405
        %v442 = vmul.f32 %v355, %v410
        %v443 = vmul.f32 %v359, %v410
        %v444 = vmul.f32 %v363, %v395
        %v445 = vmul.f32 %v367, %v395
        %v446 = vmul.f32 %v363, %v400
        %v447 = vmul.f32 %v367, %v400
        %v448 = vmul.f32 %v363, %v405
        %v449 = vmul.f32 %v367, %v405
        %v450 = vmul.f32 %v363, %v410
        %v451 = vmul.f32 %v367, %v410
        %v452 = vmul.f32 %v371, %v395
        %v453 = vmul.f32 %v375, %v395
        %v454 = vmul.f32 %v371, %v400
        %v455 = vmul.f32 %v375, %v400
        %v456 = vmul.f32 %v371, %v405
        %v457 = vmul.f32 %v375, %v405
        %v458 = vmul.f32 %v371, %v410
        %v459 = vmul.f32 %v375, %v410
        %v460 = vmul.f32 %v379, %v395
        %v461 = vmul.f32 %v383, %v395
        %v462 = vmul.f32 %v379, %v400
        %v463 = vmul.f32 %v383, %v400
        %v464 = vmul.f32 %v379, %v405
        %v465 = vmul.f32 %v383, %v405
        %v466 = vmul.f32 %v379, %v410
        %v467 = vmul.f32 %v383, %v410
        %v468 = vmul.f32 %v387, %v395
        %v469 = vmul.f32 %v391, %v395
        %v470 = vmul.f32 %v387, %v400
        %v471 = vmul.f32 %v391, %v400
        %v472 = vmul.f32 %v387, %v405
        %v473 = vmul.f32 %v391, %v405
        %v474 = vmul.f32 %v387, %v410
        %v475 = vmul.f32 %v391, %v410
        %s476 = scalar_lea.vmem %s1, 32
        %v477 = vld [vmem:[%s476] sm:$0xff]
        %v478 = vld [vmem:[%s476 + $0x8] sm:$0xff]
        %v479 = vld [vmem:[%s476 + $0x10] sm:$0xff]
        %v480 = vld [vmem:[%s476 + $0x18] sm:$0xff]
        %v481 = vlaneseq
        %v482 = vshrl.u32 %v481, 7
        %v483 = vsub.s32 1, %v482
        %v484 = vrot.slane %v228, %v483
        %v485 = vlaneseq
        %v486 = vshrl.u32 %v485, 7
        %v487 = vsub.s32 5, %v486
        %v488 = vrot.slane %v228, %v487
        %v489 = vlaneseq
        %v490 = vshrl.u32 %v489, 7
        %v491 = vsub.s32 1, %v490
        %v492 = vrot.slane %v229, %v491
        %v493 = vlaneseq
        %v494 = vshrl.u32 %v493, 7
        %v495 = vsub.s32 5, %v494
        %v496 = vrot.slane %v229, %v495
        %v497 = vlaneseq
        %v498 = vshrl.u32 %v497, 7
        %v499 = vsub.s32 1, %v498
        %v500 = vrot.slane %v230, %v499
        %v501 = vlaneseq
        %v502 = vshrl.u32 %v501, 7
        %v503 = vsub.s32 5, %v502
        %v504 = vrot.slane %v230, %v503
        %v505 = vlaneseq
        %v506 = vshrl.u32 %v505, 7
        %v507 = vsub.s32 1, %v506
        %v508 = vrot.slane %v231, %v507
        %v509 = vlaneseq
        %v510 = vshrl.u32 %v509, 7
        %v511 = vsub.s32 5, %v510
        %v512 = vrot.slane %v231, %v511
        %v513 = vlaneseq
        %v514 = vshrl.u32 %v513, 7
        %v515 = vsub.s32 1, %v514
        %v516 = vrot.slane %v232, %v515
        %v517 = vlaneseq
        %v518 = vshrl.u32 %v517, 7
        %v519 = vsub.s32 5, %v518
        %v520 = vrot.slane %v232, %v519
        %v521 = vlaneseq
        %v522 = vshrl.u32 %v521, 7
        %v523 = vsub.s32 1, %v522
        %v524 = vrot.slane %v233, %v523
        %v525 = vlaneseq
        %v526 = vshrl.u32 %v525, 7
        %v527 = vsub.s32 5, %v526
        %v528 = vrot.slane %v233, %v527
        %v529 = vlaneseq
        %v530 = vshrl.u32 %v529, 7
        %v531 = vsub.s32 1, %v530
        %v532 = vrot.slane %v234, %v531
        %v533 = vlaneseq
        %v534 = vshrl.u32 %v533, 7
        %v535 = vsub.s32 5, %v534
        %v536 = vrot.slane %v234, %v535
        %v537 = vlaneseq
        %v538 = vshrl.u32 %v537, 7
        %v539 = vsub.s32 1, %v538
        %v540 = vrot.slane %v235, %v539
        %v541 = vlaneseq
        %v542 = vshrl.u32 %v541, 7
        %v543 = vsub.s32 5, %v542
        %v544 = vrot.slane %v235, %v543
        %v561 = vlaneseq
        %v562 = vshrl.u32 %v561, 7
        %v563 = vsub.s32 1, %v562
        %v564 = vrot.slane %v484, %v563
        %v565 = vlaneseq
        %v566 = vshrl.u32 %v565, 7
        %v567 = vsub.s32 1, %v566
        %v568 = vrot.slane %v488, %v567
        %v569 = vlaneseq
        %v570 = vshrl.u32 %v569, 7
        %v571 = vsub.s32 1, %v570
        %v572 = vrot.slane %v492, %v571
        %v573 = vlaneseq
        %v574 = vshrl.u32 %v573, 7
        %v575 = vsub.s32 1, %v574
        %v576 = vrot.slane %v496, %v575
        %v577 = vlaneseq
        %v578 = vshrl.u32 %v577, 7
        %v579 = vsub.s32 1, %v578
        %v580 = vrot.slane %v500, %v579
        %v581 = vlaneseq
        %v582 = vshrl.u32 %v581, 7
        %v583 = vsub.s32 1, %v582
        %v584 = vrot.slane %v504, %v583
        %v585 = vlaneseq
        %v586 = vshrl.u32 %v585, 7
        %v587 = vsub.s32 1, %v586
        %v588 = vrot.slane %v508, %v587
        %v589 = vlaneseq
        %v590 = vshrl.u32 %v589, 7
        %v591 = vsub.s32 1, %v590
        %v592 = vrot.slane %v512, %v591
        %v593 = vlaneseq
        %v594 = vshrl.u32 %v593, 7
        %v595 = vsub.s32 1, %v594
        %v596 = vrot.slane %v516, %v595
        %v597 = vlaneseq
        %v598 = vshrl.u32 %v597, 7
        %v599 = vsub.s32 1, %v598
        %v600 = vrot.slane %v520, %v599
        %v601 = vlaneseq
        %v602 = vshrl.u32 %v601, 7
        %v603 = vsub.s32 1, %v602
        %v604 = vrot.slane %v524, %v603
        %v605 = vlaneseq
        %v606 = vshrl.u32 %v605, 7
        %v607 = vsub.s32 1, %v606
        %v608 = vrot.slane %v528, %v607
        %v609 = vlaneseq
        %v610 = vshrl.u32 %v609, 7
        %v611 = vsub.s32 1, %v610
        %v612 = vrot.slane %v532, %v611
        %v613 = vlaneseq
        %v614 = vshrl.u32 %v613, 7
        %v615 = vsub.s32 1, %v614
        %v616 = vrot.slane %v536, %v615
        %v617 = vlaneseq
        %v618 = vshrl.u32 %v617, 7
        %v619 = vsub.s32 1, %v618
        %v620 = vrot.slane %v540, %v619
        %v621 = vlaneseq
        %v622 = vshrl.u32 %v621, 7
        %v623 = vsub.s32 1, %v622
        %v624 = vrot.slane %v544, %v623
        %626 = vset.pattern.permute.xlu0 0
        %627 = vperm.xlu0 %626, %v477
        %v628 = vpop.permute.xlu0 %627
        %631 = vset.pattern.permute.xlu0 0
        %632 = vperm.xlu0 %631, %v478
        %v633 = vpop.permute.xlu0 %632
        %636 = vset.pattern.permute.xlu0 0
        %637 = vperm.xlu0 %636, %v479
        %v638 = vpop.permute.xlu0 %637
        %641 = vset.pattern.permute.xlu0 0
        %642 = vperm.xlu0 %641, %v480
        %v643 = vpop.permute.xlu0 %642
        %v645 = vmul.f32 %v564, %v628
        %v646 = vmul.f32 %v568, %v628
        %v647 = vmul.f32 %v564, %v633
        %v648 = vmul.f32 %v568, %v633
        %v649 = vmul.f32 %v564, %v638
        %v650 = vmul.f32 %v568, %v638
        %v651 = vmul.f32 %v564, %v643
        %v652 = vmul.f32 %v568, %v643
        %v653 = vmul.f32 %v572, %v628
        %v654 = vmul.f32 %v576, %v628
        %v655 = vmul.f32 %v572, %v633
        %v656 = vmul.f32 %v576, %v633
        %v657 = vmul.f32 %v572, %v638
        %v658 = vmul.f32 %v576, %v638
        %v659 = vmul.f32 %v572, %v643
        %v660 = vmul.f32 %v576, %v643
        %v661 = vmul.f32 %v580, %v628
        %v662 = vmul.f32 %v584, %v628
        %v663 = vmul.f32 %v580, %v633
        %v664 = vmul.f32 %v584, %v633
        %v665 = vmul.f32 %v580, %v638
        %v666 = vmul.f32 %v584, %v638
        %v667 = vmul.f32 %v580, %v643
        %v668 = vmul.f32 %v584, %v643
        %v669 = vmul.f32 %v588, %v628
        %v670 = vmul.f32 %v592, %v628
        %v671 = vmul.f32 %v588, %v633
        %v672 = vmul.f32 %v592, %v633
        %v673 = vmul.f32 %v588, %v638
        %v674 = vmul.f32 %v592, %v638
        %v675 = vmul.f32 %v588, %v643
        %v676 = vmul.f32 %v592, %v643
        %v677 = vmul.f32 %v596, %v628
        %v678 = vmul.f32 %v600, %v628
        %v679 = vmul.f32 %v596, %v633
        %v680 = vmul.f32 %v600, %v633
        %v681 = vmul.f32 %v596, %v638
        %v682 = vmul.f32 %v600, %v638
        %v683 = vmul.f32 %v596, %v643
        %v684 = vmul.f32 %v600, %v643
        %v685 = vmul.f32 %v604, %v628
        %v686 = vmul.f32 %v608, %v628
        %v687 = vmul.f32 %v604, %v633
        %v688 = vmul.f32 %v608, %v633
        %v689 = vmul.f32 %v604, %v638
        %v690 = vmul.f32 %v608, %v638
        %v691 = vmul.f32 %v604, %v643
        %v692 = vmul.f32 %v608, %v643
        %v693 = vmul.f32 %v612, %v628
        %v694 = vmul.f32 %v616, %v628
        %v695 = vmul.f32 %v612, %v633
        %v696 = vmul.f32 %v616, %v633
        %v697 = vmul.f32 %v612, %v638
        %v698 = vmul.f32 %v616, %v638
        %v699 = vmul.f32 %v612, %v643
        %v700 = vmul.f32 %v616, %v643
        %v701 = vmul.f32 %v620, %v628
        %v702 = vmul.f32 %v624, %v628
        %v703 = vmul.f32 %v620, %v633
        %v704 = vmul.f32 %v624, %v633
        %v705 = vmul.f32 %v620, %v638
        %v706 = vmul.f32 %v624, %v638
        %v707 = vmul.f32 %v620, %v643
        %v708 = vmul.f32 %v624, %v643
        %v709 = vadd.f32 %v412, %v645
        %v710 = vadd.f32 %v413, %v646
        %v711 = vadd.f32 %v414, %v647
        %v712 = vadd.f32 %v415, %v648
        %v713 = vadd.f32 %v416, %v649
        %v714 = vadd.f32 %v417, %v650
        %v715 = vadd.f32 %v418, %v651
        %v716 = vadd.f32 %v419, %v652
        %v717 = vadd.f32 %v420, %v653
        %v718 = vadd.f32 %v421, %v654
        %v719 = vadd.f32 %v422, %v655
        %v720 = vadd.f32 %v423, %v656
        %v721 = vadd.f32 %v424, %v657
        %v722 = vadd.f32 %v425, %v658
        %v723 = vadd.f32 %v426, %v659
        %v724 = vadd.f32 %v427, %v660
        %v725 = vadd.f32 %v428, %v661
        %v726 = vadd.f32 %v429, %v662
        %v727 = vadd.f32 %v430, %v663
        %v728 = vadd.f32 %v431, %v664
        %v729 = vadd.f32 %v432, %v665
        %v730 = vadd.f32 %v433, %v666
        %v731 = vadd.f32 %v434, %v667
        %v732 = vadd.f32 %v435, %v668
        %v733 = vadd.f32 %v436, %v669
        %v734 = vadd.f32 %v437, %v670
        %v735 = vadd.f32 %v438, %v671
        %v736 = vadd.f32 %v439, %v672
        %v737 = vadd.f32 %v440, %v673
        %v738 = vadd.f32 %v441, %v674
        %v739 = vadd.f32 %v442, %v675
        %v740 = vadd.f32 %v443, %v676
        %v741 = vadd.f32 %v444, %v677
        %v742 = vadd.f32 %v445, %v678
        %v743 = vadd.f32 %v446, %v679
        %v744 = vadd.f32 %v447, %v680
        %v745 = vadd.f32 %v448, %v681
        %v746 = vadd.f32 %v449, %v682
        %v747 = vadd.f32 %v450, %v683
        %v748 = vadd.f32 %v451, %v684
        %v749 = vadd.f32 %v452, %v685
        %v750 = vadd.f32 %v453, %v686
        %v751 = vadd.f32 %v454, %v687
        %v752 = vadd.f32 %v455, %v688
        %v753 = vadd.f32 %v456, %v689
        %v754 = vadd.f32 %v457, %v690
        %v755 = vadd.f32 %v458, %v691
        %v756 = vadd.f32 %v459, %v692
        %v757 = vadd.f32 %v460, %v693
        %v758 = vadd.f32 %v461, %v694
        %v759 = vadd.f32 %v462, %v695
        %v760 = vadd.f32 %v463, %v696
        %v761 = vadd.f32 %v464, %v697
        %v762 = vadd.f32 %v465, %v698
        %v763 = vadd.f32 %v466, %v699
        %v764 = vadd.f32 %v467, %v700
        %v765 = vadd.f32 %v468, %v701
        %v766 = vadd.f32 %v469, %v702
        %v767 = vadd.f32 %v470, %v703
        %v768 = vadd.f32 %v471, %v704
        %v769 = vadd.f32 %v472, %v705
        %v770 = vadd.f32 %v473, %v706
        %v771 = vadd.f32 %v474, %v707
        %v772 = vadd.f32 %v475, %v708
        %s773 = scalar_lea.vmem %s1, 64
        %v774 = vld [vmem:[%s773] sm:$0xff]
        %v775 = vld [vmem:[%s773 + $0x8] sm:$0xff]
        %v776 = vld [vmem:[%s773 + $0x10] sm:$0xff]
        %v777 = vld [vmem:[%s773 + $0x18] sm:$0xff]
        %v778 = vlaneseq
        %v779 = vshrl.u32 %v778, 7
        %v780 = vsub.s32 2, %v779
        %v781 = vrot.slane %v228, %v780
        %v782 = vlaneseq
        %v783 = vshrl.u32 %v782, 7
        %v784 = vsub.s32 6, %v783
        %v785 = vrot.slane %v228, %v784
        %v786 = vlaneseq
        %v787 = vshrl.u32 %v786, 7
        %v788 = vsub.s32 2, %v787
        %v789 = vrot.slane %v229, %v788
        %v790 = vlaneseq
        %v791 = vshrl.u32 %v790, 7
        %v792 = vsub.s32 6, %v791
        %v793 = vrot.slane %v229, %v792
        %v794 = vlaneseq
        %v795 = vshrl.u32 %v794, 7
        %v796 = vsub.s32 2, %v795
        %v797 = vrot.slane %v230, %v796
        %v798 = vlaneseq
        %v799 = vshrl.u32 %v798, 7
        %v800 = vsub.s32 6, %v799
        %v801 = vrot.slane %v230, %v800
        %v802 = vlaneseq
        %v803 = vshrl.u32 %v802, 7
        %v804 = vsub.s32 2, %v803
        %v805 = vrot.slane %v231, %v804
        %v806 = vlaneseq
        %v807 = vshrl.u32 %v806, 7
        %v808 = vsub.s32 6, %v807
        %v809 = vrot.slane %v231, %v808
        %v810 = vlaneseq
        %v811 = vshrl.u32 %v810, 7
        %v812 = vsub.s32 2, %v811
        %v813 = vrot.slane %v232, %v812
        %v814 = vlaneseq
        %v815 = vshrl.u32 %v814, 7
        %v816 = vsub.s32 6, %v815
        %v817 = vrot.slane %v232, %v816
        %v818 = vlaneseq
        %v819 = vshrl.u32 %v818, 7
        %v820 = vsub.s32 2, %v819
        %v821 = vrot.slane %v233, %v820
        %v822 = vlaneseq
        %v823 = vshrl.u32 %v822, 7
        %v824 = vsub.s32 6, %v823
        %v825 = vrot.slane %v233, %v824
        %v826 = vlaneseq
        %v827 = vshrl.u32 %v826, 7
        %v828 = vsub.s32 2, %v827
        %v829 = vrot.slane %v234, %v828
        %v830 = vlaneseq
        %v831 = vshrl.u32 %v830, 7
        %v832 = vsub.s32 6, %v831
        %v833 = vrot.slane %v234, %v832
        %v834 = vlaneseq
        %v835 = vshrl.u32 %v834, 7
        %v836 = vsub.s32 2, %v835
        %v837 = vrot.slane %v235, %v836
        %v838 = vlaneseq
        %v839 = vshrl.u32 %v838, 7
        %v840 = vsub.s32 6, %v839
        %v841 = vrot.slane %v235, %v840
        %v858 = vlaneseq
        %v859 = vshrl.u32 %v858, 7
        %v860 = vsub.s32 2, %v859
        %v861 = vrot.slane %v781, %v860
        %v862 = vlaneseq
        %v863 = vshrl.u32 %v862, 7
        %v864 = vsub.s32 2, %v863
        %v865 = vrot.slane %v785, %v864
        %v866 = vlaneseq
        %v867 = vshrl.u32 %v866, 7
        %v868 = vsub.s32 2, %v867
        %v869 = vrot.slane %v789, %v868
        %v870 = vlaneseq
        %v871 = vshrl.u32 %v870, 7
        %v872 = vsub.s32 2, %v871
        %v873 = vrot.slane %v793, %v872
        %v874 = vlaneseq
        %v875 = vshrl.u32 %v874, 7
        %v876 = vsub.s32 2, %v875
        %v877 = vrot.slane %v797, %v876
        %v878 = vlaneseq
        %v879 = vshrl.u32 %v878, 7
        %v880 = vsub.s32 2, %v879
        %v881 = vrot.slane %v801, %v880
        %v882 = vlaneseq
        %v883 = vshrl.u32 %v882, 7
        %v884 = vsub.s32 2, %v883
        %v885 = vrot.slane %v805, %v884
        %v886 = vlaneseq
        %v887 = vshrl.u32 %v886, 7
        %v888 = vsub.s32 2, %v887
        %v889 = vrot.slane %v809, %v888
        %v890 = vlaneseq
        %v891 = vshrl.u32 %v890, 7
        %v892 = vsub.s32 2, %v891
        %v893 = vrot.slane %v813, %v892
        %v894 = vlaneseq
        %v895 = vshrl.u32 %v894, 7
        %v896 = vsub.s32 2, %v895
        %v897 = vrot.slane %v817, %v896
        %v898 = vlaneseq
        %v899 = vshrl.u32 %v898, 7
        %v900 = vsub.s32 2, %v899
        %v901 = vrot.slane %v821, %v900
        %v902 = vlaneseq
        %v903 = vshrl.u32 %v902, 7
        %v904 = vsub.s32 2, %v903
        %v905 = vrot.slane %v825, %v904
        %v906 = vlaneseq
        %v907 = vshrl.u32 %v906, 7
        %v908 = vsub.s32 2, %v907
        %v909 = vrot.slane %v829, %v908
        %v910 = vlaneseq
        %v911 = vshrl.u32 %v910, 7
        %v912 = vsub.s32 2, %v911
        %v913 = vrot.slane %v833, %v912
        %v914 = vlaneseq
        %v915 = vshrl.u32 %v914, 7
        %v916 = vsub.s32 2, %v915
        %v917 = vrot.slane %v837, %v916
        %v918 = vlaneseq
        %v919 = vshrl.u32 %v918, 7
        %v920 = vsub.s32 2, %v919
        %v921 = vrot.slane %v841, %v920
        %923 = vset.pattern.permute.xlu0 0
        %924 = vperm.xlu0 %923, %v774
        %v925 = vpop.permute.xlu0 %924
        %928 = vset.pattern.permute.xlu0 0
        %929 = vperm.xlu0 %928, %v775
        %v930 = vpop.permute.xlu0 %929
        %933 = vset.pattern.permute.xlu0 0
        %934 = vperm.xlu0 %933, %v776
        %v935 = vpop.permute.xlu0 %934
        %938 = vset.pattern.permute.xlu0 0
        %939 = vperm.xlu0 %938, %v777
        %v940 = vpop.permute.xlu0 %939
        %v942 = vmul.f32 %v861, %v925
        %v943 = vmul.f32 %v865, %v925
        %v944 = vmul.f32 %v861, %v930
        %v945 = vmul.f32 %v865, %v930
        %v946 = vmul.f32 %v861, %v935
        %v947 = vmul.f32 %v865, %v935
        %v948 = vmul.f32 %v861, %v940
        %v949 = vmul.f32 %v865, %v940
        %v950 = vmul.f32 %v869, %v925
        %v951 = vmul.f32 %v873, %v925
        %v952 = vmul.f32 %v869, %v930
        %v953 = vmul.f32 %v873, %v930
        %v954 = vmul.f32 %v869, %v935
        %v955 = vmul.f32 %v873, %v935
        %v956 = vmul.f32 %v869, %v940
        %v957 = vmul.f32 %v873, %v940
        %v958 = vmul.f32 %v877, %v925
        %v959 = vmul.f32 %v881, %v925
        %v960 = vmul.f32 %v877, %v930
        %v961 = vmul.f32 %v881, %v930
        %v962 = vmul.f32 %v877, %v935
        %v963 = vmul.f32 %v881, %v935
        %v964 = vmul.f32 %v877, %v940
        %v965 = vmul.f32 %v881, %v940
        %v966 = vmul.f32 %v885, %v925
        %v967 = vmul.f32 %v889, %v925
        %v968 = vmul.f32 %v885, %v930
        %v969 = vmul.f32 %v889, %v930
        %v970 = vmul.f32 %v885, %v935
        %v971 = vmul.f32 %v889, %v935
        %v972 = vmul.f32 %v885, %v940
        %v973 = vmul.f32 %v889, %v940
        %v974 = vmul.f32 %v893, %v925
        %v975 = vmul.f32 %v897, %v925
        %v976 = vmul.f32 %v893, %v930
        %v977 = vmul.f32 %v897, %v930
        %v978 = vmul.f32 %v893, %v935
        %v979 = vmul.f32 %v897, %v935
        %v980 = vmul.f32 %v893, %v940
        %v981 = vmul.f32 %v897, %v940
        %v982 = vmul.f32 %v901, %v925
        %v983 = vmul.f32 %v905, %v925
        %v984 = vmul.f32 %v901, %v930
        %v985 = vmul.f32 %v905, %v930
        %v986 = vmul.f32 %v901, %v935
        %v987 = vmul.f32 %v905, %v935
        %v988 = vmul.f32 %v901, %v940
        %v989 = vmul.f32 %v905, %v940
        %v990 = vmul.f32 %v909, %v925
        %v991 = vmul.f32 %v913, %v925
        %v992 = vmul.f32 %v909, %v930
        %v993 = vmul.f32 %v913, %v930
        %v994 = vmul.f32 %v909, %v935
        %v995 = vmul.f32 %v913, %v935
        %v996 = vmul.f32 %v909, %v940
        %v997 = vmul.f32 %v913, %v940
        %v998 = vmul.f32 %v917, %v925
        %v999 = vmul.f32 %v921, %v925
        %v1000 = vmul.f32 %v917, %v930
        %v1001 = vmul.f32 %v921, %v930
        %v1002 = vmul.f32 %v917, %v935
        %v1003 = vmul.f32 %v921, %v935
        %v1004 = vmul.f32 %v917, %v940
        %v1005 = vmul.f32 %v921, %v940
        %v1006 = vadd.f32 %v709, %v942
        %v1007 = vadd.f32 %v710, %v943
        %v1008 = vadd.f32 %v711, %v944
        %v1009 = vadd.f32 %v712, %v945
        %v1010 = vadd.f32 %v713, %v946
        %v1011 = vadd.f32 %v714, %v947
        %v1012 = vadd.f32 %v715, %v948
        %v1013 = vadd.f32 %v716, %v949
        %v1014 = vadd.f32 %v717, %v950
        %v1015 = vadd.f32 %v718, %v951
        %v1016 = vadd.f32 %v719, %v952
        %v1017 = vadd.f32 %v720, %v953
        %v1018 = vadd.f32 %v721, %v954
        %v1019 = vadd.f32 %v722, %v955
        %v1020 = vadd.f32 %v723, %v956
        %v1021 = vadd.f32 %v724, %v957
        %v1022 = vadd.f32 %v725, %v958
        %v1023 = vadd.f32 %v726, %v959
        %v1024 = vadd.f32 %v727, %v960
        %v1025 = vadd.f32 %v728, %v961
        %v1026 = vadd.f32 %v729, %v962
        %v1027 = vadd.f32 %v730, %v963
        %v1028 = vadd.f32 %v731, %v964
        %v1029 = vadd.f32 %v732, %v965
        %v1030 = vadd.f32 %v733, %v966
        %v1031 = vadd.f32 %v734, %v967
        %v1032 = vadd.f32 %v735, %v968
        %v1033 = vadd.f32 %v736, %v969
        %v1034 = vadd.f32 %v737, %v970
        %v1035 = vadd.f32 %v738, %v971
        %v1036 = vadd.f32 %v739, %v972
        %v1037 = vadd.f32 %v740, %v973
        %v1038 = vadd.f32 %v741, %v974
        %v1039 = vadd.f32 %v742, %v975
        %v1040 = vadd.f32 %v743, %v976
        %v1041 = vadd.f32 %v744, %v977
        %v1042 = vadd.f32 %v745, %v978
        %v1043 = vadd.f32 %v746, %v979
        %v1044 = vadd.f32 %v747, %v980
        %v1045 = vadd.f32 %v748, %v981
        %v1046 = vadd.f32 %v749, %v982
        %v1047 = vadd.f32 %v750, %v983
        %v1048 = vadd.f32 %v751, %v984
        %v1049 = vadd.f32 %v752, %v985
        %v1050 = vadd.f32 %v753, %v986
        %v1051 = vadd.f32 %v754, %v987
        %v1052 = vadd.f32 %v755, %v988
        %v1053 = vadd.f32 %v756, %v989
        %v1054 = vadd.f32 %v757, %v990
        %v1055 = vadd.f32 %v758, %v991
        %v1056 = vadd.f32 %v759, %v992
        %v1057 = vadd.f32 %v760, %v993
        %v1058 = vadd.f32 %v761, %v994
        %v1059 = vadd.f32 %v762, %v995
        %v1060 = vadd.f32 %v763, %v996
        %v1061 = vadd.f32 %v764, %v997
        %v1062 = vadd.f32 %v765, %v998
        %v1063 = vadd.f32 %v766, %v999
        %v1064 = vadd.f32 %v767, %v1000
        %v1065 = vadd.f32 %v768, %v1001
        %v1066 = vadd.f32 %v769, %v1002
        %v1067 = vadd.f32 %v770, %v1003
        %v1068 = vadd.f32 %v771, %v1004
        %v1069 = vadd.f32 %v772, %v1005
        %s1070 = scalar_lea.vmem %s1, 96
        %v1071 = vld [vmem:[%s1070] sm:$0xff]
        %v1072 = vld [vmem:[%s1070 + $0x8] sm:$0xff]
        %v1073 = vld [vmem:[%s1070 + $0x10] sm:$0xff]
        %v1074 = vld [vmem:[%s1070 + $0x18] sm:$0xff]
        %v1075 = vlaneseq
        %v1076 = vshrl.u32 %v1075, 7
        %v1077 = vsub.s32 3, %v1076
        %v1078 = vrot.slane %v228, %v1077
        %v1079 = vlaneseq
        %v1080 = vshrl.u32 %v1079, 7
        %v1081 = vsub.s32 7, %v1080
        %v1082 = vrot.slane %v228, %v1081
        %v1083 = vlaneseq
        %v1084 = vshrl.u32 %v1083, 7
        %v1085 = vsub.s32 3, %v1084
        %v1086 = vrot.slane %v229, %v1085
        %v1087 = vlaneseq
        %v1088 = vshrl.u32 %v1087, 7
        %v1089 = vsub.s32 7, %v1088
        %v1090 = vrot.slane %v229, %v1089
        %v1091 = vlaneseq
        %v1092 = vshrl.u32 %v1091, 7
        %v1093 = vsub.s32 3, %v1092
        %v1094 = vrot.slane %v230, %v1093
        %v1095 = vlaneseq
        %v1096 = vshrl.u32 %v1095, 7
        %v1097 = vsub.s32 7, %v1096
        %v1098 = vrot.slane %v230, %v1097
        %v1099 = vlaneseq
        %v1100 = vshrl.u32 %v1099, 7
        %v1101 = vsub.s32 3, %v1100
        %v1102 = vrot.slane %v231, %v1101
        %v1103 = vlaneseq
        %v1104 = vshrl.u32 %v1103, 7
        %v1105 = vsub.s32 7, %v1104
        %v1106 = vrot.slane %v231, %v1105
        %v1107 = vlaneseq
        %v1108 = vshrl.u32 %v1107, 7
        %v1109 = vsub.s32 3, %v1108
        %v1110 = vrot.slane %v232, %v1109
        %v1111 = vlaneseq
        %v1112 = vshrl.u32 %v1111, 7
        %v1113 = vsub.s32 7, %v1112
        %v1114 = vrot.slane %v232, %v1113
        %v1115 = vlaneseq
        %v1116 = vshrl.u32 %v1115, 7
        %v1117 = vsub.s32 3, %v1116
        %v1118 = vrot.slane %v233, %v1117
        %v1119 = vlaneseq
        %v1120 = vshrl.u32 %v1119, 7
        %v1121 = vsub.s32 7, %v1120
        %v1122 = vrot.slane %v233, %v1121
        %v1123 = vlaneseq
        %v1124 = vshrl.u32 %v1123, 7
        %v1125 = vsub.s32 3, %v1124
        %v1126 = vrot.slane %v234, %v1125
        %v1127 = vlaneseq
        %v1128 = vshrl.u32 %v1127, 7
        %v1129 = vsub.s32 7, %v1128
        %v1130 = vrot.slane %v234, %v1129
        %v1131 = vlaneseq
        %v1132 = vshrl.u32 %v1131, 7
        %v1133 = vsub.s32 3, %v1132
        %v1134 = vrot.slane %v235, %v1133
        %v1135 = vlaneseq
        %v1136 = vshrl.u32 %v1135, 7
        %v1137 = vsub.s32 7, %v1136
        %v1138 = vrot.slane %v235, %v1137
        %v1155 = vlaneseq
        %v1156 = vshrl.u32 %v1155, 7
        %v1157 = vsub.s32 3, %v1156
        %v1158 = vrot.slane %v1078, %v1157
        %v1159 = vlaneseq
        %v1160 = vshrl.u32 %v1159, 7
        %v1161 = vsub.s32 3, %v1160
        %v1162 = vrot.slane %v1082, %v1161
        %v1163 = vlaneseq
        %v1164 = vshrl.u32 %v1163, 7
        %v1165 = vsub.s32 3, %v1164
        %v1166 = vrot.slane %v1086, %v1165
        %v1167 = vlaneseq
        %v1168 = vshrl.u32 %v1167, 7
        %v1169 = vsub.s32 3, %v1168
        %v1170 = vrot.slane %v1090, %v1169
        %v1171 = vlaneseq
        %v1172 = vshrl.u32 %v1171, 7
        %v1173 = vsub.s32 3, %v1172
        %v1174 = vrot.slane %v1094, %v1173
        %v1175 = vlaneseq
        %v1176 = vshrl.u32 %v1175, 7
        %v1177 = vsub.s32 3, %v1176
        %v1178 = vrot.slane %v1098, %v1177
        %v1179 = vlaneseq
        %v1180 = vshrl.u32 %v1179, 7
        %v1181 = vsub.s32 3, %v1180
        %v1182 = vrot.slane %v1102, %v1181
        %v1183 = vlaneseq
        %v1184 = vshrl.u32 %v1183, 7
        %v1185 = vsub.s32 3, %v1184
        %v1186 = vrot.slane %v1106, %v1185
        %v1187 = vlaneseq
        %v1188 = vshrl.u32 %v1187, 7
        %v1189 = vsub.s32 3, %v1188
        %v1190 = vrot.slane %v1110, %v1189
        %v1191 = vlaneseq
        %v1192 = vshrl.u32 %v1191, 7
        %v1193 = vsub.s32 3, %v1192
        %v1194 = vrot.slane %v1114, %v1193
        %v1195 = vlaneseq
        %v1196 = vshrl.u32 %v1195, 7
        %v1197 = vsub.s32 3, %v1196
        %v1198 = vrot.slane %v1118, %v1197
        %v1199 = vlaneseq
        %v1200 = vshrl.u32 %v1199, 7
        %v1201 = vsub.s32 3, %v1200
        %v1202 = vrot.slane %v1122, %v1201
        %v1203 = vlaneseq
        %v1204 = vshrl.u32 %v1203, 7
        %v1205 = vsub.s32 3, %v1204
        %v1206 = vrot.slane %v1126, %v1205
        %v1207 = vlaneseq
        %v1208 = vshrl.u32 %v1207, 7
        %v1209 = vsub.s32 3, %v1208
        %v1210 = vrot.slane %v1130, %v1209
        %v1211 = vlaneseq
        %v1212 = vshrl.u32 %v1211, 7
        %v1213 = vsub.s32 3, %v1212
        %v1214 = vrot.slane %v1134, %v1213
        %v1215 = vlaneseq
        %v1216 = vshrl.u32 %v1215, 7
        %v1217 = vsub.s32 3, %v1216
        %v1218 = vrot.slane %v1138, %v1217
        %1220 = vset.pattern.permute.xlu0 0
        %1221 = vperm.xlu0 %1220, %v1071
        %v1222 = vpop.permute.xlu0 %1221
        %1225 = vset.pattern.permute.xlu0 0
        %1226 = vperm.xlu0 %1225, %v1072
        %v1227 = vpop.permute.xlu0 %1226
        %1230 = vset.pattern.permute.xlu0 0
        %1231 = vperm.xlu0 %1230, %v1073
        %v1232 = vpop.permute.xlu0 %1231
        %1235 = vset.pattern.permute.xlu0 0
        %1236 = vperm.xlu0 %1235, %v1074
        %v1237 = vpop.permute.xlu0 %1236
        %v1239 = vmul.f32 %v1158, %v1222
        %v1240 = vmul.f32 %v1162, %v1222
        %v1241 = vmul.f32 %v1158, %v1227
        %v1242 = vmul.f32 %v1162, %v1227
        %v1243 = vmul.f32 %v1158, %v1232
        %v1244 = vmul.f32 %v1162, %v1232
        %v1245 = vmul.f32 %v1158, %v1237
        %v1246 = vmul.f32 %v1162, %v1237
        %v1247 = vmul.f32 %v1166, %v1222
        %v1248 = vmul.f32 %v1170, %v1222
        %v1249 = vmul.f32 %v1166, %v1227
        %v1250 = vmul.f32 %v1170, %v1227
        %v1251 = vmul.f32 %v1166, %v1232
        %v1252 = vmul.f32 %v1170, %v1232
        %v1253 = vmul.f32 %v1166, %v1237
        %v1254 = vmul.f32 %v1170, %v1237
        %v1255 = vmul.f32 %v1174, %v1222
        %v1256 = vmul.f32 %v1178, %v1222
        %v1257 = vmul.f32 %v1174, %v1227
        %v1258 = vmul.f32 %v1178, %v1227
        %v1259 = vmul.f32 %v1174, %v1232
        %v1260 = vmul.f32 %v1178, %v1232
        %v1261 = vmul.f32 %v1174, %v1237
        %v1262 = vmul.f32 %v1178, %v1237
        %v1263 = vmul.f32 %v1182, %v1222
        %v1264 = vmul.f32 %v1186, %v1222
        %v1265 = vmul.f32 %v1182, %v1227
        %v1266 = vmul.f32 %v1186, %v1227
        %v1267 = vmul.f32 %v1182, %v1232
        %v1268 = vmul.f32 %v1186, %v1232
        %v1269 = vmul.f32 %v1182, %v1237
        %v1270 = vmul.f32 %v1186, %v1237
        %v1271 = vmul.f32 %v1190, %v1222
        %v1272 = vmul.f32 %v1194, %v1222
        %v1273 = vmul.f32 %v1190, %v1227
        %v1274 = vmul.f32 %v1194, %v1227
        %v1275 = vmul.f32 %v1190, %v1232
        %v1276 = vmul.f32 %v1194, %v1232
        %v1277 = vmul.f32 %v1190, %v1237
        %v1278 = vmul.f32 %v1194, %v1237
        %v1279 = vmul.f32 %v1198, %v1222
        %v1280 = vmul.f32 %v1202, %v1222
        %v1281 = vmul.f32 %v1198, %v1227
        %v1282 = vmul.f32 %v1202, %v1227
        %v1283 = vmul.f32 %v1198, %v1232
        %v1284 = vmul.f32 %v1202, %v1232
        %v1285 = vmul.f32 %v1198, %v1237
        %v1286 = vmul.f32 %v1202, %v1237
        %v1287 = vmul.f32 %v1206, %v1222
        %v1288 = vmul.f32 %v1210, %v1222
        %v1289 = vmul.f32 %v1206, %v1227
        %v1290 = vmul.f32 %v1210, %v1227
        %v1291 = vmul.f32 %v1206, %v1232
        %v1292 = vmul.f32 %v1210, %v1232
        %v1293 = vmul.f32 %v1206, %v1237
        %v1294 = vmul.f32 %v1210, %v1237
        %v1295 = vmul.f32 %v1214, %v1222
        %v1296 = vmul.f32 %v1218, %v1222
        %v1297 = vmul.f32 %v1214, %v1227
        %v1298 = vmul.f32 %v1218, %v1227
        %v1299 = vmul.f32 %v1214, %v1232
        %v1300 = vmul.f32 %v1218, %v1232
        %v1301 = vmul.f32 %v1214, %v1237
        %v1302 = vmul.f32 %v1218, %v1237
        %v1303 = vadd.f32 %v1006, %v1239
        %v1304 = vadd.f32 %v1007, %v1240
        %v1305 = vadd.f32 %v1008, %v1241
        %v1306 = vadd.f32 %v1009, %v1242
        %v1307 = vadd.f32 %v1010, %v1243
        %v1308 = vadd.f32 %v1011, %v1244
        %v1309 = vadd.f32 %v1012, %v1245
        %v1310 = vadd.f32 %v1013, %v1246
        %v1311 = vadd.f32 %v1014, %v1247
        %v1312 = vadd.f32 %v1015, %v1248
        %v1313 = vadd.f32 %v1016, %v1249
        %v1314 = vadd.f32 %v1017, %v1250
        %v1315 = vadd.f32 %v1018, %v1251
        %v1316 = vadd.f32 %v1019, %v1252
        %v1317 = vadd.f32 %v1020, %v1253
        %v1318 = vadd.f32 %v1021, %v1254
        %v1319 = vadd.f32 %v1022, %v1255
        %v1320 = vadd.f32 %v1023, %v1256
        %v1321 = vadd.f32 %v1024, %v1257
        %v1322 = vadd.f32 %v1025, %v1258
        %v1323 = vadd.f32 %v1026, %v1259
        %v1324 = vadd.f32 %v1027, %v1260
        %v1325 = vadd.f32 %v1028, %v1261
        %v1326 = vadd.f32 %v1029, %v1262
        %v1327 = vadd.f32 %v1030, %v1263
        %v1328 = vadd.f32 %v1031, %v1264
        %v1329 = vadd.f32 %v1032, %v1265
        %v1330 = vadd.f32 %v1033, %v1266
        %v1331 = vadd.f32 %v1034, %v1267
        %v1332 = vadd.f32 %v1035, %v1268
        %v1333 = vadd.f32 %v1036, %v1269
        %v1334 = vadd.f32 %v1037, %v1270
        %v1335 = vadd.f32 %v1038, %v1271
        %v1336 = vadd.f32 %v1039, %v1272
        %v1337 = vadd.f32 %v1040, %v1273
        %v1338 = vadd.f32 %v1041, %v1274
        %v1339 = vadd.f32 %v1042, %v1275
        %v1340 = vadd.f32 %v1043, %v1276
        %v1341 = vadd.f32 %v1044, %v1277
        %v1342 = vadd.f32 %v1045, %v1278
        %v1343 = vadd.f32 %v1046, %v1279
        %v1344 = vadd.f32 %v1047, %v1280
        %v1345 = vadd.f32 %v1048, %v1281
        %v1346 = vadd.f32 %v1049, %v1282
        %v1347 = vadd.f32 %v1050, %v1283
        %v1348 = vadd.f32 %v1051, %v1284
        %v1349 = vadd.f32 %v1052, %v1285
        %v1350 = vadd.f32 %v1053, %v1286
        %v1351 = vadd.f32 %v1054, %v1287
        %v1352 = vadd.f32 %v1055, %v1288
        %v1353 = vadd.f32 %v1056, %v1289
        %v1354 = vadd.f32 %v1057, %v1290
        %v1355 = vadd.f32 %v1058, %v1291
        %v1356 = vadd.f32 %v1059, %v1292
        %v1357 = vadd.f32 %v1060, %v1293
        %v1358 = vadd.f32 %v1061, %v1294
        %v1359 = vadd.f32 %v1062, %v1295
        %v1360 = vadd.f32 %v1063, %v1296
        %v1361 = vadd.f32 %v1064, %v1297
        %v1362 = vadd.f32 %v1065, %v1298
        %v1363 = vadd.f32 %v1066, %v1299
        %v1364 = vadd.f32 %v1067, %v1300
        %v1365 = vadd.f32 %v1068, %v1301
        %v1366 = vadd.f32 %v1069, %v1302
        %v1367 = vld [vmem:[%s2] sm:$0xff]
        %v1368 = vld [vmem:[%s2 + $0x8] sm:$0xff]
        %v1369 = vld [vmem:[%s2 + $0x10] sm:$0xff]
        %v1370 = vld [vmem:[%s2 + $0x18] sm:$0xff]
        %1372 = vset.pattern.permute.xlu0 0
        %1373 = vperm.xlu0 %1372, %v1367
        %v1374 = vpop.permute.xlu0 %1373
        %1377 = vset.pattern.permute.xlu0 0
        %1378 = vperm.xlu0 %1377, %v1368
        %v1379 = vpop.permute.xlu0 %1378
        %1382 = vset.pattern.permute.xlu0 0
        %1383 = vperm.xlu0 %1382, %v1369
        %v1384 = vpop.permute.xlu0 %1383
        %1387 = vset.pattern.permute.xlu0 0
        %1388 = vperm.xlu0 %1387, %v1370
        %v1389 = vpop.permute.xlu0 %1388
        %v1391 = vadd.f32 %v1303, %v1374
        %v1392 = vadd.f32 %v1304, %v1374
        %v1393 = vadd.f32 %v1305, %v1379
        %v1394 = vadd.f32 %v1306, %v1379
        %v1395 = vadd.f32 %v1307, %v1384
        %v1396 = vadd.f32 %v1308, %v1384
        %v1397 = vadd.f32 %v1309, %v1389
        %v1398 = vadd.f32 %v1310, %v1389
        %v1399 = vadd.f32 %v1311, %v1374
        %v1400 = vadd.f32 %v1312, %v1374
        %v1401 = vadd.f32 %v1313, %v1379
        %v1402 = vadd.f32 %v1314, %v1379
        %v1403 = vadd.f32 %v1315, %v1384
        %v1404 = vadd.f32 %v1316, %v1384
        %v1405 = vadd.f32 %v1317, %v1389
        %v1406 = vadd.f32 %v1318, %v1389
        %v1407 = vadd.f32 %v1319, %v1374
        %v1408 = vadd.f32 %v1320, %v1374
        %v1409 = vadd.f32 %v1321, %v1379
        %v1410 = vadd.f32 %v1322, %v1379
        %v1411 = vadd.f32 %v1323, %v1384
        %v1412 = vadd.f32 %v1324, %v1384
        %v1413 = vadd.f32 %v1325, %v1389
        %v1414 = vadd.f32 %v1326, %v1389
        %v1415 = vadd.f32 %v1327, %v1374
        %v1416 = vadd.f32 %v1328, %v1374
        %v1417 = vadd.f32 %v1329, %v1379
        %v1418 = vadd.f32 %v1330, %v1379
        %v1419 = vadd.f32 %v1331, %v1384
        %v1420 = vadd.f32 %v1332, %v1384
        %v1421 = vadd.f32 %v1333, %v1389
        %v1422 = vadd.f32 %v1334, %v1389
        %v1423 = vadd.f32 %v1335, %v1374
        %v1424 = vadd.f32 %v1336, %v1374
        %v1425 = vadd.f32 %v1337, %v1379
        %v1426 = vadd.f32 %v1338, %v1379
        %v1427 = vadd.f32 %v1339, %v1384
        %v1428 = vadd.f32 %v1340, %v1384
        %v1429 = vadd.f32 %v1341, %v1389
        %v1430 = vadd.f32 %v1342, %v1389
        %v1431 = vadd.f32 %v1343, %v1374
        %v1432 = vadd.f32 %v1344, %v1374
        %v1433 = vadd.f32 %v1345, %v1379
        %v1434 = vadd.f32 %v1346, %v1379
        %v1435 = vadd.f32 %v1347, %v1384
        %v1436 = vadd.f32 %v1348, %v1384
        %v1437 = vadd.f32 %v1349, %v1389
        %v1438 = vadd.f32 %v1350, %v1389
        %v1439 = vadd.f32 %v1351, %v1374
        %v1440 = vadd.f32 %v1352, %v1374
        %v1441 = vadd.f32 %v1353, %v1379
        %v1442 = vadd.f32 %v1354, %v1379
        %v1443 = vadd.f32 %v1355, %v1384
        %v1444 = vadd.f32 %v1356, %v1384
        %v1445 = vadd.f32 %v1357, %v1389
        %v1446 = vadd.f32 %v1358, %v1389
        %v1447 = vadd.f32 %v1359, %v1374
        %v1448 = vadd.f32 %v1360, %v1374
        %v1449 = vadd.f32 %v1361, %v1379
        %v1450 = vadd.f32 %v1362, %v1379
        %v1451 = vadd.f32 %v1363, %v1384
        %v1452 = vadd.f32 %v1364, %v1384
        %v1453 = vadd.f32 %v1365, %v1389
        %v1454 = vadd.f32 %v1366, %v1389
        %v1455 = vmax.f32 %v1391, 0.0
        %v1456 = vmax.f32 %v1392, 0.0
        %v1457 = vmax.f32 %v1393, 0.0
        %v1458 = vmax.f32 %v1394, 0.0
        %v1459 = vmax.f32 %v1395, 0.0
        %v1460 = vmax.f32 %v1396, 0.0
        %v1461 = vmax.f32 %v1397, 0.0
        %v1462 = vmax.f32 %v1398, 0.0
        %v1463 = vmax.f32 %v1399, 0.0
        %v1464 = vmax.f32 %v1400, 0.0
        %v1465 = vmax.f32 %v1401, 0.0
        %v1466 = vmax.f32 %v1402, 0.0
        %v1467 = vmax.f32 %v1403, 0.0
        %v1468 = vmax.f32 %v1404, 0.0
        %v1469 = vmax.f32 %v1405, 0.0
        %v1470 = vmax.f32 %v1406, 0.0
        %v1471 = vmax.f32 %v1407, 0.0
        %v1472 = vmax.f32 %v1408, 0.0
        %v1473 = vmax.f32 %v1409, 0.0
        %v1474 = vmax.f32 %v1410, 0.0
        %v1475 = vmax.f32 %v1411, 0.0
        %v1476 = vmax.f32 %v1412, 0.0
        %v1477 = vmax.f32 %v1413, 0.0
        %v1478 = vmax.f32 %v1414, 0.0
        %v1479 = vmax.f32 %v1415, 0.0
        %v1480 = vmax.f32 %v1416, 0.0
        %v1481 = vmax.f32 %v1417, 0.0
        %v1482 = vmax.f32 %v1418, 0.0
        %v1483 = vmax.f32 %v1419, 0.0
        %v1484 = vmax.f32 %v1420, 0.0
        %v1485 = vmax.f32 %v1421, 0.0
        %v1486 = vmax.f32 %v1422, 0.0
        %v1487 = vmax.f32 %v1423, 0.0
        %v1488 = vmax.f32 %v1424, 0.0
        %v1489 = vmax.f32 %v1425, 0.0
        %v1490 = vmax.f32 %v1426, 0.0
        %v1491 = vmax.f32 %v1427, 0.0
        %v1492 = vmax.f32 %v1428, 0.0
        %v1493 = vmax.f32 %v1429, 0.0
        %v1494 = vmax.f32 %v1430, 0.0
        %v1495 = vmax.f32 %v1431, 0.0
        %v1496 = vmax.f32 %v1432, 0.0
        %v1497 = vmax.f32 %v1433, 0.0
        %v1498 = vmax.f32 %v1434, 0.0
        %v1499 = vmax.f32 %v1435, 0.0
        %v1500 = vmax.f32 %v1436, 0.0
        %v1501 = vmax.f32 %v1437, 0.0
        %v1502 = vmax.f32 %v1438, 0.0
        %v1503 = vmax.f32 %v1439, 0.0
        %v1504 = vmax.f32 %v1440, 0.0
        %v1505 = vmax.f32 %v1441, 0.0
        %v1506 = vmax.f32 %v1442, 0.0
        %v1507 = vmax.f32 %v1443, 0.0
        %v1508 = vmax.f32 %v1444, 0.0
        %v1509 = vmax.f32 %v1445, 0.0
        %v1510 = vmax.f32 %v1446, 0.0
        %v1511 = vmax.f32 %v1447, 0.0
        %v1512 = vmax.f32 %v1448, 0.0
        %v1513 = vmax.f32 %v1449, 0.0
        %v1514 = vmax.f32 %v1450, 0.0
        %v1515 = vmax.f32 %v1451, 0.0
        %v1516 = vmax.f32 %v1452, 0.0
        %v1517 = vmax.f32 %v1453, 0.0
        %v1518 = vmax.f32 %v1454, 0.0
        %v1519 = vadd.f32 %v1455, %v1456
        %1520 = vadd.xlane.f32.xlu0 %v1519
        %v1521 = vpop.xlane.xlu0 %1520
        %v1522 = vadd.f32 %v1457, %v1458
        %1523 = vadd.xlane.f32.xlu0 %v1522
        %v1524 = vpop.xlane.xlu0 %1523
        %v1525 = vadd.f32 %v1459, %v1460
        %1526 = vadd.xlane.f32.xlu0 %v1525
        %v1527 = vpop.xlane.xlu0 %1526
        %v1528 = vadd.f32 %v1461, %v1462
        %1529 = vadd.xlane.f32.xlu0 %v1528
        %v1530 = vpop.xlane.xlu0 %1529
        %v1531 = vadd.f32 %v1463, %v1464
        %1532 = vadd.xlane.f32.xlu0 %v1531
        %v1533 = vpop.xlane.xlu0 %1532
        %v1534 = vadd.f32 %v1465, %v1466
        %1535 = vadd.xlane.f32.xlu0 %v1534
        %v1536 = vpop.xlane.xlu0 %1535
        %v1537 = vadd.f32 %v1467, %v1468
        %1538 = vadd.xlane.f32.xlu0 %v1537
        %v1539 = vpop.xlane.xlu0 %1538
        %v1540 = vadd.f32 %v1469, %v1470
        %1541 = vadd.xlane.f32.xlu0 %v1540
        %v1542 = vpop.xlane.xlu0 %1541
        %v1543 = vadd.f32 %v1471, %v1472
        %1544 = vadd.xlane.f32.xlu0 %v1543
        %v1545 = vpop.xlane.xlu0 %1544
        %v1546 = vadd.f32 %v1473, %v1474
        %1547 = vadd.xlane.f32.xlu0 %v1546
        %v1548 = vpop.xlane.xlu0 %1547
        %v1549 = vadd.f32 %v1475, %v1476
        %1550 = vadd.xlane.f32.xlu0 %v1549
        %v1551 = vpop.xlane.xlu0 %1550
        %v1552 = vadd.f32 %v1477, %v1478
        %1553 = vadd.xlane.f32.xlu0 %v1552
        %v1554 = vpop.xlane.xlu0 %1553
        %v1555 = vadd.f32 %v1479, %v1480
        %1556 = vadd.xlane.f32.xlu0 %v1555
        %v1557 = vpop.xlane.xlu0 %1556
        %v1558 = vadd.f32 %v1481, %v1482
        %1559 = vadd.xlane.f32.xlu0 %v1558
        %v1560 = vpop.xlane.xlu0 %1559
        %v1561 = vadd.f32 %v1483, %v1484
        %1562 = vadd.xlane.f32.xlu0 %v1561
        %v1563 = vpop.xlane.xlu0 %1562
        %v1564 = vadd.f32 %v1485, %v1486
        %1565 = vadd.xlane.f32.xlu0 %v1564
        %v1566 = vpop.xlane.xlu0 %1565
        %v1567 = vadd.f32 %v1487, %v1488
        %1568 = vadd.xlane.f32.xlu0 %v1567
        %v1569 = vpop.xlane.xlu0 %1568
        %v1570 = vadd.f32 %v1489, %v1490
        %1571 = vadd.xlane.f32.xlu0 %v1570
        %v1572 = vpop.xlane.xlu0 %1571
        %v1573 = vadd.f32 %v1491, %v1492
        %1574 = vadd.xlane.f32.xlu0 %v1573
        %v1575 = vpop.xlane.xlu0 %1574
        %v1576 = vadd.f32 %v1493, %v1494
        %1577 = vadd.xlane.f32.xlu0 %v1576
        %v1578 = vpop.xlane.xlu0 %1577
        %v1579 = vadd.f32 %v1495, %v1496
        %1580 = vadd.xlane.f32.xlu0 %v1579
        %v1581 = vpop.xlane.xlu0 %1580
        %v1582 = vadd.f32 %v1497, %v1498
        %1583 = vadd.xlane.f32.xlu0 %v1582
        %v1584 = vpop.xlane.xlu0 %1583
        %v1585 = vadd.f32 %v1499, %v1500
        %1586 = vadd.xlane.f32.xlu0 %v1585
        %v1587 = vpop.xlane.xlu0 %1586
        %v1588 = vadd.f32 %v1501, %v1502
        %1589 = vadd.xlane.f32.xlu0 %v1588
        %v1590 = vpop.xlane.xlu0 %1589
        %v1591 = vadd.f32 %v1503, %v1504
        %1592 = vadd.xlane.f32.xlu0 %v1591
        %v1593 = vpop.xlane.xlu0 %1592
        %v1594 = vadd.f32 %v1505, %v1506
        %1595 = vadd.xlane.f32.xlu0 %v1594
        %v1596 = vpop.xlane.xlu0 %1595
        %v1597 = vadd.f32 %v1507, %v1508
        %1598 = vadd.xlane.f32.xlu0 %v1597
        %v1599 = vpop.xlane.xlu0 %1598
        %v1600 = vadd.f32 %v1509, %v1510
        %1601 = vadd.xlane.f32.xlu0 %v1600
        %v1602 = vpop.xlane.xlu0 %1601
        %v1603 = vadd.f32 %v1511, %v1512
        %1604 = vadd.xlane.f32.xlu0 %v1603
        %v1605 = vpop.xlane.xlu0 %1604
        %v1606 = vadd.f32 %v1513, %v1514
        %1607 = vadd.xlane.f32.xlu0 %v1606
        %v1608 = vpop.xlane.xlu0 %1607
        %v1609 = vadd.f32 %v1515, %v1516
        %1610 = vadd.xlane.f32.xlu0 %v1609
        %v1611 = vpop.xlane.xlu0 %1610
        %v1612 = vadd.f32 %v1517, %v1518
        %1613 = vadd.xlane.f32.xlu0 %v1612
        %v1614 = vpop.xlane.xlu0 %1613
        %v1615 = vmul.f32 %v1521, 0.00390625
        %v1616 = vmul.f32 %v1524, 0.00390625
        %v1617 = vmul.f32 %v1527, 0.00390625
        %v1618 = vmul.f32 %v1530, 0.00390625
        %v1619 = vmul.f32 %v1533, 0.00390625
        %v1620 = vmul.f32 %v1536, 0.00390625
        %v1621 = vmul.f32 %v1539, 0.00390625
        %v1622 = vmul.f32 %v1542, 0.00390625
        %v1623 = vmul.f32 %v1545, 0.00390625
        %v1624 = vmul.f32 %v1548, 0.00390625
        %v1625 = vmul.f32 %v1551, 0.00390625
        %v1626 = vmul.f32 %v1554, 0.00390625
        %v1627 = vmul.f32 %v1557, 0.00390625
        %v1628 = vmul.f32 %v1560, 0.00390625
        %v1629 = vmul.f32 %v1563, 0.00390625
        %v1630 = vmul.f32 %v1566, 0.00390625
        %v1631 = vmul.f32 %v1569, 0.00390625
        %v1632 = vmul.f32 %v1572, 0.00390625
        %v1633 = vmul.f32 %v1575, 0.00390625
        %v1634 = vmul.f32 %v1578, 0.00390625
        %v1635 = vmul.f32 %v1581, 0.00390625
        %v1636 = vmul.f32 %v1584, 0.00390625
        %v1637 = vmul.f32 %v1587, 0.00390625
        %v1638 = vmul.f32 %v1590, 0.00390625
        %v1639 = vmul.f32 %v1593, 0.00390625
        %v1640 = vmul.f32 %v1596, 0.00390625
        %v1641 = vmul.f32 %v1599, 0.00390625
        %v1642 = vmul.f32 %v1602, 0.00390625
        %v1643 = vmul.f32 %v1605, 0.00390625
        %v1644 = vmul.f32 %v1608, 0.00390625
        %v1645 = vmul.f32 %v1611, 0.00390625
        %v1646 = vmul.f32 %v1614, 0.00390625
        %v1647 = vld [vmem:[%s3] sm:$0xff]
        %v1648 = vld [vmem:[%s3 + $0x8] sm:$0xff]
        %v1649 = vld [vmem:[%s3 + $0x10] sm:$0xff]
        %v1650 = vld [vmem:[%s3 + $0x18] sm:$0xff]
        %v1651 = vld [vmem:[%s4] sm:$0x1]
        %v1653 = vlaneseq
        %v1654 = vshrl.u32 %v1653, 7
        %v1655 = vsub.s32 0, %v1654
        %v1656 = vrot.slane %v1651, %v1655
        %v1690 = vlaneseq
        %v1691 = vand.u32 %v1690, 127
        %v1692 = vlaneseq
        %v1693 = vshrl.u32 %v1692, 7
        %v1694 = vsub.s32 %v1691, %v1693
        %v1695 = vrot.slane %v1615, %v1694
        %v1696 = vadd.s32 %v1691, 4294967288
        %v1697 = vlaneseq
        %v1698 = vshrl.u32 %v1697, 7
        %v1699 = vsub.s32 %v1696, %v1698
        %v1700 = vrot.slane %v1616, %v1699
        %vm1701 = vcmask 130112
        %v1702 = vsel %vm1701, %v1700, %v1695
        %v1703 = vadd.s32 %v1691, 4294967280
        %v1704 = vlaneseq
        %v1705 = vshrl.u32 %v1704, 7
        %v1706 = vsub.s32 %v1703, %v1705
        %v1707 = vrot.slane %v1617, %v1706
        %vm1708 = vcmask 195712
        %v1709 = vsel %vm1708, %v1707, %v1702
        %v1710 = vadd.s32 %v1691, 4294967272
        %v1711 = vlaneseq
        %v1712 = vshrl.u32 %v1711, 7
        %v1713 = vsub.s32 %v1710, %v1712
        %v1714 = vrot.slane %v1618, %v1713
        %vm1715 = vcmask 261312
        %v1716 = vsel %vm1715, %v1714, %v1709
        %v1717 = vlaneseq
        %v1718 = vshrl.u32 %v1717, 7
        %v1719 = vsub.s32 %v1691, %v1718
        %v1720 = vrot.slane %v1619, %v1719
        %v1721 = vlaneseq
        %v1722 = vshrl.u32 %v1721, 7
        %v1723 = vsub.s32 %v1696, %v1722
        %v1724 = vrot.slane %v1620, %v1723
        %v1725 = vsel %vm1701, %v1724, %v1720
        %v1726 = vlaneseq
        %v1727 = vshrl.u32 %v1726, 7
        %v1728 = vsub.s32 %v1703, %v1727
        %v1729 = vrot.slane %v1621, %v1728
        %v1730 = vsel %vm1708, %v1729, %v1725
        %v1731 = vlaneseq
        %v1732 = vshrl.u32 %v1731, 7
        %v1733 = vsub.s32 %v1710, %v1732
        %v1734 = vrot.slane %v1622, %v1733
        %v1735 = vsel %vm1715, %v1734, %v1730
        %v1736 = vlaneseq
        %v1737 = vshrl.u32 %v1736, 7
        %v1738 = vsub.s32 %v1691, %v1737
        %v1739 = vrot.slane %v1623, %v1738
        %v1740 = vlaneseq
        %v1741 = vshrl.u32 %v1740, 7
        %v1742 = vsub.s32 %v1696, %v1741
        %v1743 = vrot.slane %v1624, %v1742
        %v1744 = vsel %vm1701, %v1743, %v1739
        %v1745 = vlaneseq
        %v1746 = vshrl.u32 %v1745, 7
        %v1747 = vsub.s32 %v1703, %v1746
        %v1748 = vrot.slane %v1625, %v1747
        %v1749 = vsel %vm1708, %v1748, %v1744
        %v1750 = vlaneseq
        %v1751 = vshrl.u32 %v1750, 7
        %v1752 = vsub.s32 %v1710, %v1751
        %v1753 = vrot.slane %v1626, %v1752
        %v1754 = vsel %vm1715, %v1753, %v1749
        %v1755 = vlaneseq
        %v1756 = vshrl.u32 %v1755, 7
        %v1757 = vsub.s32 %v1691, %v1756
        %v1758 = vrot.slane %v1627, %v1757
        %v1759 = vlaneseq
        %v1760 = vshrl.u32 %v1759, 7
        %v1761 = vsub.s32 %v1696, %v1760
        %v1762 = vrot.slane %v1628, %v1761
        %v1763 = vsel %vm1701, %v1762, %v1758
        %v1764 = vlaneseq
        %v1765 = vshrl.u32 %v1764, 7
        %v1766 = vsub.s32 %v1703, %v1765
        %v1767 = vrot.slane %v1629, %v1766
        %v1768 = vsel %vm1708, %v1767, %v1763
        %v1769 = vlaneseq
        %v1770 = vshrl.u32 %v1769, 7
        %v1771 = vsub.s32 %v1710, %v1770
        %v1772 = vrot.slane %v1630, %v1771
        %v1773 = vsel %vm1715, %v1772, %v1768
        %v1774 = vlaneseq
        %v1775 = vshrl.u32 %v1774, 7
        %v1776 = vsub.s32 %v1691, %v1775
        %v1777 = vrot.slane %v1631, %v1776
        %v1778 = vlaneseq
        %v1779 = vshrl.u32 %v1778, 7
        %v1780 = vsub.s32 %v1696, %v1779
        %v1781 = vrot.slane %v1632, %v1780
        %v1782 = vsel %vm1701, %v1781, %v1777
        %v1783 = vlaneseq
        %v1784 = vshrl.u32 %v1783, 7
        %v1785 = vsub.s32 %v1703, %v1784
        %v1786 = vrot.slane %v1633, %v1785
        %v1787 = vsel %vm1708, %v1786, %v1782
        %v1788 = vlaneseq
        %v1789 = vshrl.u32 %v1788, 7
        %v1790 = vsub.s32 %v1710, %v1789
        %v1791 = vrot.slane %v1634, %v1790
        %v1792 = vsel %vm1715, %v1791, %v1787
        %v1793 = vlaneseq
        %v1794 = vshrl.u32 %v1793, 7
        %v1795 = vsub.s32 %v1691, %v1794
        %v1796 = vrot.slane %v1635, %v1795
        %v1797 = vlaneseq
        %v1798 = vshrl.u32 %v1797, 7
        %v1799 = vsub.s32 %v1696, %v1798
        %v1800 = vrot.slane %v1636, %v1799
        %v1801 = vsel %vm1701, %v1800, %v1796
        %v1802 = vlaneseq
        %v1803 = vshrl.u32 %v1802, 7
        %v1804 = vsub.s32 %v1703, %v1803
        %v1805 = vrot.slane %v1637, %v1804
        %v1806 = vsel %vm1708, %v1805, %v1801
        %v1807 = vlaneseq
        %v1808 = vshrl.u32 %v1807, 7
        %v1809 = vsub.s32 %v1710, %v1808
        %v1810 = vrot.slane %v1638, %v1809
        %v1811 = vsel %vm1715, %v1810, %v1806
        %v1812 = vlaneseq
        %v1813 = vshrl.u32 %v1812, 7
        %v1814 = vsub.s32 %v1691, %v1813
        %v1815 = vrot.slane %v1639, %v1814
        %v1816 = vlaneseq
        %v1817 = vshrl.u32 %v1816, 7
        %v1818 = vsub.s32 %v1696, %v1817
        %v1819 = vrot.slane %v1640, %v1818
        %v1820 = vsel %vm1701, %v1819, %v1815
        %v1821 = vlaneseq
        %v1822 = vshrl.u32 %v1821, 7
        %v1823 = vsub.s32 %v1703, %v1822
        %v1824 = vrot.slane %v1641, %v1823
        %v1825 = vsel %vm1708, %v1824, %v1820
        %v1826 = vlaneseq
        %v1827 = vshrl.u32 %v1826, 7
        %v1828 = vsub.s32 %v1710, %v1827
        %v1829 = vrot.slane %v1642, %v1828
        %v1830 = vsel %vm1715, %v1829, %v1825
        %v1831 = vlaneseq
        %v1832 = vshrl.u32 %v1831, 7
        %v1833 = vsub.s32 %v1691, %v1832
        %v1834 = vrot.slane %v1643, %v1833
        %v1835 = vlaneseq
        %v1836 = vshrl.u32 %v1835, 7
        %v1837 = vsub.s32 %v1696, %v1836
        %v1838 = vrot.slane %v1644, %v1837
        %v1839 = vsel %vm1701, %v1838, %v1834
        %v1840 = vlaneseq
        %v1841 = vshrl.u32 %v1840, 7
        %v1842 = vsub.s32 %v1703, %v1841
        %v1843 = vrot.slane %v1645, %v1842
        %v1844 = vsel %vm1708, %v1843, %v1839
        %v1845 = vlaneseq
        %v1846 = vshrl.u32 %v1845, 7
        %v1847 = vsub.s32 %v1710, %v1846
        %v1848 = vrot.slane %v1646, %v1847
        %v1849 = vsel %vm1715, %v1848, %v1844
        %vm1850 = vcmask 1041409
        %v1851 = vsel %vm1850, %v1735, %v1716
        %vm1852 = vcmask 1042434
        %v1853 = vsel %vm1852, %v1754, %v1851
        %vm1854 = vcmask 1043459
        %v1855 = vsel %vm1854, %v1773, %v1853
        %vm1856 = vcmask 1044484
        %v1857 = vsel %vm1856, %v1792, %v1855
        %vm1858 = vcmask 1045509
        %v1859 = vsel %vm1858, %v1811, %v1857
        %vm1860 = vcmask 1046534
        %v1861 = vsel %vm1860, %v1830, %v1859
        %vm1862 = vcmask 1047559
        %v1863 = vsel %vm1862, %v1849, %v1861
        %vm1864 = vcmask 261120
        %v1865 = vsel %vm1864, %v1863, 0
        %1867 = vmatprep.subr.mxu0 0.0
        %1868 = vmatpush1.msra.mxu0 0.0
        %1869 = vmatprep.subr.mxu0 0.0
        %1870 = vmatpush1.msra.mxu0 0.0
        %1871 = vmatprep.subr.mxu0 0.0
        %1872 = vmatpush1.msra.mxu0 0.0
        %1873 = vmatprep.subr.mxu0 0.0
        %1874 = vmatpush1.msra.mxu0 0.0
        %1875 = vmatprep.subr.mxu0 0.0
        %1876 = vmatpush1.msra.mxu0 0.0
        %1877 = vmatprep.subr.mxu0 0.0
        %1878 = vmatpush1.msra.mxu0 0.0
        %1879 = vmatprep.subr.mxu0 0.0
        %1880 = vmatpush1.msra.mxu0 0.0
        %1881 = vmatprep.subr.mxu0 0.0
        %1882 = vmatpush1.msra.mxu0 0.0
        %1883 = vmatprep.subr.mxu0 0.0
        %1884 = vmatpush1.msra.mxu0 0.0
        %1885 = vmatprep.subr.mxu0 0.0
        %1886 = vmatpush1.msra.mxu0 0.0
        %1887 = vmatprep.subr.mxu0 0.0
        %1888 = vmatpush1.msra.mxu0 0.0
        %1889 = vmatprep.subr.mxu0 0.0
        %1890 = vmatpush1.msra.mxu0 0.0
        %1891 = vmatprep.subr.mxu0 0.0
        %1892 = vmatpush1.msra.mxu0 %v1650
        %1893 = vmatprep.subr.mxu0 0.0
        %1894 = vmatpush1.msra.mxu0 %v1649
        %1895 = vmatprep.subr.mxu0 0.0
        %1896 = vmatpush1.msra.mxu0 %v1648
        %1897 = vmatprep.subr.mxu0 0.0
        %1898 = vmatpush1.msra.mxu0 %v1647
        %1899 = vmatprep.subr.mxu0 0.0
        %1900 = vmatpush2.msra.mxu0 0.0
        %1901 = vmatprep.subr.mxu0 0.0
        %1902 = vmatpush2.msra.mxu0 0.0
        %1903 = vmatprep.subr.mxu0 0.0
        %1904 = vmatpush2.msra.mxu0 0.0
        %1905 = vmatprep.subr.mxu0 0.0
        %1906 = vmatpush2.msra.mxu0 0.0
        %1907 = vmatprep.subr.mxu0 0.0
        %1908 = vmatpush2.msra.mxu0 0.0
        %1909 = vmatprep.subr.mxu0 0.0
        %1910 = vmatpush2.msra.mxu0 0.0
        %1911 = vmatprep.subr.mxu0 0.0
        %1912 = vmatpush2.msra.mxu0 0.0
        %1913 = vmatprep.subr.mxu0 0.0
        %1914 = vmatpush2.msra.mxu0 0.0
        %1915 = vmatprep.subr.mxu0 0.0
        %1916 = vmatpush2.msra.mxu0 0.0
        %1917 = vmatprep.subr.mxu0 0.0
        %1918 = vmatpush2.msra.mxu0 0.0
        %1919 = vmatprep.subr.mxu0 0.0
        %1920 = vmatpush2.msra.mxu0 0.0
        %1921 = vmatprep.subr.mxu0 0.0
        %1922 = vmatpush2.msra.mxu0 0.0
        %1923 = vmatprep.subr.mxu0 0.0
        %1924 = vmatpush2.msra.mxu0 0.0
        %1925 = vmatprep.subr.mxu0 0.0
        %1926 = vmatpush2.msra.mxu0 0.0
        %1927 = vmatprep.subr.mxu0 0.0
        %1928 = vmatpush2.msra.mxu0 0.0
        %1929 = vmatprep.subr.mxu0 0.0
        %1930 = vmatpush2.msra.mxu0 0.0
        %1931 = vmatprep.mubr.f32.mxu0 0.0
        %1932 = vmatmul.mubr.f32.gmra.mxu0 %v1865
        %v1933 = vpop.f32.mrf.mxu0
        %v1934 = vadd.f32 %v1656, %v1933
        %v1935 = vpop.f32.mrf.mxu0
        %1936 = vdwg.mxu0
        %1937 = vst.msk [vmem:[%s220] sm:$0xff] %vm1864, %v1934
        %s1938 = sand.u32 %s137, 1
        %s1939 = scalar_lea.sflag [#allocation3], %s1938
        %s1940 = sand.u32 %s137, 1
        %s1941 = smul.addr %s1940, 8
        %s1942 = scalar_lea.vmem [#allocation2], %s1941
        // Predicated region
        $region41: #{feature_extractor_forward.1} parent=39 // pred_check
          %p1943 = pneg %p147
        $region42: #{feature_extractor_forward.1} parent=39 // pred_check_branch
          %1945 = sbr.rel (%p1943) target = $region44
        $region43: #{feature_extractor_forward.1} parent=39 // pred_region
          %s1947 = ssub.s32 128, 128
          %1948 = vsyncadd %s1939, %s1947
          %s1949 = smul.addr %s19, 128
          %s1950 = scalar_lea.hbm %s5, %s1949
          %s1952 = sshll.u32 %s1942, 4
          %s1953 = int_to_ptr.vmem [resolvable:$true] %s1952
          %1955 = dma.vmem_to_hbm [thread:$0]  %s1953, 128, %s1950, %s1939
        $region44: #{feature_extractor_forward.1} parent=39 // pred_fallthru
          _
      $region40: #{feature_extractor_forward.1} parent=5 // pred_fallthru
        _
      %p1956 = scmp.le.s32.totalorder 2, %s14
      // Predicated region
      $region45: #{feature_extractor_forward.1} parent=5 // pred_check
        %p1957 = pneg %p1956
      $region46: #{feature_extractor_forward.1} parent=5 // pred_check_branch
        %1959 = sbr.rel (%p1957) target = $region48
      $region47: #{feature_extractor_forward.1} parent=5 // pred_region
        %s1960 = ssub.s32 %s14, 2
        // Predicated region
        $region49: #{feature_extractor_forward.1} parent=47 // pred_check
          %p1961 = pneg %p153
        $region50: #{feature_extractor_forward.1} parent=47 // pred_check_branch
          %1963 = sbr.rel (%p1961) target = $region52
        $region51: #{feature_extractor_forward.1} parent=47 // pred_region
          %s1964 = sand.u32 %s138, 1
          %s1965 = scalar_lea.sflag [#allocation3], %s1964
          %s1966 = sand.u32 %s138, 1
          %s1967 = smul.addr %s1966, 8
          %s1968 = scalar_lea.vmem [#allocation2], %s1967
          %1969 = dma.done %s1965, 128
        $region52: #{feature_extractor_forward.1} parent=47 // pred_fallthru
          _
      $region48: #{feature_extractor_forward.1} parent=5 // pred_fallthru
        _
    $region6: #{feature_extractor_forward.1} parent=1 // loop_footer
      %s18 = sadd.s32 1, %s14
    $region7: #{feature_extractor_forward.1} parent=1 // loop_footer_branch
      %13 = sbr.rel target = $region3
    $region8: #{feature_extractor_forward.1} parent=1 // loop_exit
      _
    %1970 = vsyncpa [#allocation3], 1
    %s1971 = scalar_lea.sflag [#allocation3], 1
    %1972 = vsyncpa %s1971, 1

</llo_original>
